<compile_context>
chip_gen: v6e
topology: v6e:2x2x1
jax: 0.10.0
libtpu: 0.0.40
codegen_flags: <defaults>
</compile_context>

<pallas_src>
import functools

import jax
import jax.numpy as jnp
from jax.experimental import pallas as pl
from jax.experimental.pallas import tpu as pltpu

IMG_SIDE = 28
IN_DIM = IMG_SIDE * IMG_SIDE        # 784
HIDDEN = 128                        # latent size (lane-friendly)


def _sigmoid_eup(z):
    # exp and approximate reciprocal both run on the EUP slot (separate VLIW
    # slot from the VPU), avoiding a multi-instruction Newton divide.
    return pl.reciprocal(1.0 + jnp.exp(-z), approx=True)


def _ae_kernel(x_ref, we_ref, be_ref, wd_ref, bd_ref, o_ref):
    """One batch-tile of the autoencoder forward.

    x_ref : (TB, 784)  input rows, f32 (cast to bf16 in-kernel for the MXU)
    we_ref: (784, 128) encoder weight, bf16
    be_ref: (1, 128)   encoder bias, f32
    wd_ref: (128, 784) decoder weight, bf16
    bd_ref: (1, 784)   decoder bias, f32
    o_ref : (TB, 784)  reconstruction, bf16 (or f32 if requested)
    """
    x = x_ref[...].astype(jnp.bfloat16)

    # encoder: sigmoid(x @ We + be) -- bf16 MXU matmul, f32 accumulate/epilogue
    h = jnp.dot(x, we_ref[...], preferred_element_type=jnp.float32)
    h = _sigmoid_eup(h + be_ref[...])

    # decoder: sigmoid(h @ Wd + bd)
    y = jnp.dot(h.astype(jnp.bfloat16), wd_ref[...],
                preferred_element_type=jnp.float32)
    y = _sigmoid_eup(y + bd_ref[...])

    o_ref[...] = y.astype(o_ref.dtype)


def _round_up(x, m):
    return ((x + m - 1) // m) * m


def _choose_tiling(B):
    """Pick (B_pad, batch_tile): minimal row padding (multiple of 16 for bf16
    sublane packing), >=2 tiles when possible so v7x's two TensorCores both get
    work, and 512-row tiles for large batches to amortize grid-step overhead."""
    B16 = _round_up(B, 16)
    if B16 <= 1024:
        if B16 >= 32:
            return B16, B16 // 2          # 2 tiles, each a multiple of 8
        return B16, B16                   # tiny batch: single tile
    tile = 512
    return _round_up(B16, tile), tile


@functools.partial(jax.jit, static_argnames=("out_dtype",))
def autoencoder_forward(x_nchw, we, be, wd, bd, *, out_dtype=jnp.bfloat16):
    """Forward pass: decoder(encoder(x)).  x_nchw: (B, 1, 28, 28) float32."""
    B = x_nchw.shape[0]
    assert x_nchw.shape[1:] == (1, IMG_SIDE, IMG_SIDE)

    # glue: flatten exactly like torch.flatten(x, 1) (row-major NCHW); free.
    x_flat = x_nchw.reshape(B, IN_DIM)

    B_pad, batch_tile = _choose_tiling(B)
    if B_pad != B:
        # only a small row pad (<=15 rows for small batches); no lane pad/cast.
        x_flat = jnp.pad(x_flat, ((0, B_pad - B), (0, 0)))

    # weights are tiny (~100k params each): cast once to bf16, stay VMEM-resident.
    we_b = we.astype(jnp.bfloat16)
    wd_b = wd.astype(jnp.bfloat16)
    be2 = be.reshape(1, HIDDEN).astype(jnp.float32)
    bd2 = bd.reshape(1, IN_DIM).astype(jnp.float32)

    grid = (B_pad // batch_tile,)
    out_bytes = jnp.dtype(out_dtype).itemsize

    cost = pl.CostEstimate(
        flops=4 * B_pad * IN_DIM * HIDDEN,                 # two matmuls (2*M*K*N each)
        transcendentals=2 * B_pad * (HIDDEN + IN_DIM),     # exp + reciprocal per sigmoid
        bytes_accessed=(B_pad * IN_DIM * 4                 # x tiles (f32)
                        + B_pad * IN_DIM * out_bytes       # output
                        + we_b.size * 2 + wd_b.size * 2    # weights (bf16)
                        + be2.size * 4 + bd2.size * 4),
    )

    out_flat = pl.pallas_call(
        _ae_kernel,
        out_shape=jax.ShapeDtypeStruct((B_pad, IN_DIM), out_dtype),
        grid_spec=pltpu.PrefetchScalarGridSpec(
            num_scalar_prefetch=0,
            grid=grid,
            in_specs=[
                pl.BlockSpec((batch_tile, IN_DIM), lambda i: (i, 0)),  # x tile
                pl.BlockSpec((IN_DIM, HIDDEN), lambda i: (0, 0)),      # We (resident)
                pl.BlockSpec((1, HIDDEN), lambda i: (0, 0)),           # be
                pl.BlockSpec((HIDDEN, IN_DIM), lambda i: (0, 0)),      # Wd (resident)
                pl.BlockSpec((1, IN_DIM), lambda i: (0, 0)),           # bd
            ],
            out_specs=pl.BlockSpec((batch_tile, IN_DIM), lambda i: (i, 0)),
        ),
        compiler_params=pltpu.CompilerParams(
            dimension_semantics=("parallel",),
        ),
        cost_estimate=cost,
    )(x_flat, we_b, be2, wd_b, bd2)

    if B_pad != B:
        out_flat = out_flat[:B]          # drop padded rows (sigmoid(bias) garbage)
    return out_flat.reshape(B, 1, IMG_SIDE, IMG_SIDE)


def init_params(key):
    """Deterministic PyTorch-Linear-style init: U(-1/sqrt(fan_in), 1/sqrt(fan_in))."""
    k1, k2, k3, k4 = jax.random.split(key, 4)
    bound_e = 1.0 / jnp.sqrt(jnp.float32(IN_DIM))
    bound_d = 1.0 / jnp.sqrt(jnp.float32(HIDDEN))
    we = jax.random.uniform(k1, (IN_DIM, HIDDEN), jnp.float32, -bound_e, bound_e)
    be = jax.random.uniform(k2, (HIDDEN,), jnp.float32, -bound_e, bound_e)
    wd = jax.random.uniform(k3, (HIDDEN, IN_DIM), jnp.float32, -bound_d, bound_d)
    bd = jax.random.uniform(k4, (IN_DIM,), jnp.float32, -bound_d, bound_d)
    return we, be, wd, bd


def _reference_forward(x_nchw, we, be, wd, bd):
    """Plain-JAX reference with the same bf16-matmul / f32-epilogue recipe."""
    x = x_nchw.reshape(x_nchw.shape[0], -1).astype(jnp.bfloat16)
    h = jnp.dot(x, we.astype(jnp.bfloat16), preferred_element_type=jnp.float32)
    h = jax.nn.sigmoid(h + be)
    y = jnp.dot(h.astype(jnp.bfloat16), wd.astype(jnp.bfloat16),
                preferred_element_type=jnp.float32)
    y = jax.nn.sigmoid(y + bd)
    return y.reshape(x_nchw.shape)


if __name__ == "__main__":
    key = jax.random.PRNGKey(0)
    k_params, k_x = jax.random.split(key)

    we, be, wd, bd = init_params(k_params)

    # Small MNIST-like batches.  B=37 exercises the row-padding path
    # (37 -> 48 rows, two 24-row tiles); B=64 exercises the no-padding path.
    for B in (37, 64):
        x = jax.random.uniform(jax.random.fold_in(k_x, B),
                               (B, 1, IMG_SIDE, IMG_SIDE), jnp.float32)

        out = autoencoder_forward(x, we, be, wd, bd)
        out = jax.block_until_ready(out)

        ref = _reference_forward(x, we, be, wd, bd)
        assert out.shape == x.shape, (out.shape, x.shape)
        err = float(jnp.max(jnp.abs(out.astype(jnp.float32) - ref)))
        # bf16 output rounding (~4e-3 on [0,1]) + approx-reciprocal sigmoid
        assert err < 1.5e-2, f"mismatch vs reference at B={B}: {err}"

    print("KERNEL_OK")
</pallas_src>

<mosaic_0001>
module attributes {stable_mosaic.version = 11 : i64} {
  func.func @_ae_kernel(%arg0: i32, %arg1: memref<24x784xf32, #tpu.memory_space<vmem>>, %arg2: memref<784x128xbf16, #tpu.memory_space<vmem>>, %arg3: memref<1x128xf32, #tpu.memory_space<vmem>>, %arg4: memref<128x784xbf16, #tpu.memory_space<vmem>>, %arg5: memref<1x784xf32, #tpu.memory_space<vmem>>, %arg6: memref<24x784xbf16, #tpu.memory_space<vmem>>) attributes {dimension_semantics = [#tpu.dimension_semantics<parallel>], iteration_bounds = array<i64: 2>, scalar_prefetch = 0 : i64, scratch_operands = 0 : i64, tpu.core_type = #tpu.core_type<tc>, window_params = [{transform_indices = @transform_0, window_bounds = array<i64: 24, 784>}, {pipeline_mode = #tpu.pipeline_mode<synchronous>, transform_indices = @transform_1, window_bounds = array<i64: 784, 128>}, {pipeline_mode = #tpu.pipeline_mode<synchronous>, transform_indices = @transform_2, window_bounds = array<i64: 1, 128>}, {pipeline_mode = #tpu.pipeline_mode<synchronous>, transform_indices = @transform_3, window_bounds = array<i64: 128, 784>}, {pipeline_mode = #tpu.pipeline_mode<synchronous>, transform_indices = @transform_4, window_bounds = array<i64: 1, 784>}, {transform_indices = @transform_5, window_bounds = array<i64: 24, 784>}]} {
    %c0 = arith.constant 0 : index
    %c0_0 = arith.constant 0 : index
    %0 = vector.load %arg1[%c0, %c0_0] : memref<24x784xf32, #tpu.memory_space<vmem>>, vector<24x784xf32>
    %1 = arith.truncf %0 : vector<24x784xf32> to vector<24x784xbf16>
    %c0_1 = arith.constant 0 : index
    %c0_2 = arith.constant 0 : index
    %2 = vector.load %arg2[%c0_1, %c0_2] : memref<784x128xbf16, #tpu.memory_space<vmem>>, vector<784x128xbf16>
    %cst = arith.constant dense<0.000000e+00> : vector<24x128xf32>
    %3 = tpu.matmul %1, %2, %cst {dimension_numbers = #tpu.dot_dimension_numbers<[1], [0], [0], [1], [0, 0, 1, 1], [], []>} : vector<24x784xbf16>, vector<784x128xbf16>, vector<24x128xf32> -> vector<24x128xf32>
    %c0_3 = arith.constant 0 : index
    %c0_4 = arith.constant 0 : index
    %4 = vector.load %arg3[%c0_3, %c0_4] : memref<1x128xf32, #tpu.memory_space<vmem>>, vector<1x128xf32>
    %5 = vector.broadcast %4 : vector<1x128xf32> to vector<24x128xf32>
    %6 = arith.addf %3, %5 : vector<24x128xf32>
    %cst_5 = arith.constant 0.000000e+00 : f32
    %7 = vector.broadcast %cst_5 : f32 to vector<24x128xf32>
    %8 = arith.subf %7, %6 : vector<24x128xf32>
    %9 = math.exp %8 : vector<24x128xf32>
    %cst_6 = arith.constant 1.000000e+00 : f32
    %10 = vector.broadcast %cst_6 : f32 to vector<24x128xf32>
    %11 = arith.addf %10, %9 : vector<24x128xf32>
    %12 = tpu.reciprocal %11 {approx = true} : vector<24x128xf32> -> vector<24x128xf32>
    %13 = arith.truncf %12 : vector<24x128xf32> to vector<24x128xbf16>
    %c0_7 = arith.constant 0 : index
    %c0_8 = arith.constant 0 : index
    %14 = vector.load %arg4[%c0_7, %c0_8] : memref<128x784xbf16, #tpu.memory_space<vmem>>, vector<128x784xbf16>
    %cst_9 = arith.constant dense<0.000000e+00> : vector<24x784xf32>
    %15 = tpu.matmul %13, %14, %cst_9 {dimension_numbers = #tpu.dot_dimension_numbers<[1], [0], [0], [1], [0, 0, 1, 1], [], []>} : vector<24x128xbf16>, vector<128x784xbf16>, vector<24x784xf32> -> vector<24x784xf32>
    %c0_10 = arith.constant 0 : index
    %c0_11 = arith.constant 0 : index
    %16 = vector.load %arg5[%c0_10, %c0_11] : memref<1x784xf32, #tpu.memory_space<vmem>>, vector<1x784xf32>
    %17 = vector.broadcast %16 : vector<1x784xf32> to vector<24x784xf32>
    %18 = arith.addf %15, %17 : vector<24x784xf32>
    %cst_12 = arith.constant 0.000000e+00 : f32
    %19 = vector.broadcast %cst_12 : f32 to vector<24x784xf32>
    %20 = arith.subf %19, %18 : vector<24x784xf32>
    %21 = math.exp %20 : vector<24x784xf32>
    %cst_13 = arith.constant 1.000000e+00 : f32
    %22 = vector.broadcast %cst_13 : f32 to vector<24x784xf32>
    %23 = arith.addf %22, %21 : vector<24x784xf32>
    %24 = tpu.reciprocal %23 {approx = true} : vector<24x784xf32> -> vector<24x784xf32>
    %25 = arith.truncf %24 : vector<24x784xf32> to vector<24x784xbf16>
    %c0_14 = arith.constant 0 : index
    %c0_15 = arith.constant 0 : index
    %26 = vector.load %arg6[%c0_14, %c0_15] : memref<24x784xbf16, #tpu.memory_space<vmem>>, vector<24x784xbf16>
    tpu.vector_store %arg6[%c0_14, %c0_15], %25 {strides = array<i32>} : memref<24x784xbf16, #tpu.memory_space<vmem>>, vector<24x784xbf16>,
    return
  }
  func.func @transform_0(%arg0: i32) -> (i32, i32) {
    %c0_i32 = arith.constant 0 : i32
    %c0_i32_0 = arith.constant 0 : i32
    return %arg0, %c0_i32 : i32, i32
  }
  func.func @transform_1(%arg0: i32) -> (i32, i32) {
    %c0_i32 = arith.constant 0 : i32
    %c0_i32_0 = arith.constant 0 : i32
    %c0_i32_1 = arith.constant 0 : i32
    return %c0_i32, %c0_i32_0 : i32, i32
  }
  func.func @transform_2(%arg0: i32) -> (i32, i32) {
    %c0_i32 = arith.constant 0 : i32
    %c0_i32_0 = arith.constant 0 : i32
    %c0_i32_1 = arith.constant 0 : i32
    return %c0_i32, %c0_i32_0 : i32, i32
  }
  func.func @transform_3(%arg0: i32) -> (i32, i32) {
    %c0_i32 = arith.constant 0 : i32
    %c0_i32_0 = arith.constant 0 : i32
    %c0_i32_1 = arith.constant 0 : i32
    return %c0_i32, %c0_i32_0 : i32, i32
  }
  func.func @transform_4(%arg0: i32) -> (i32, i32) {
    %c0_i32 = arith.constant 0 : i32
    %c0_i32_0 = arith.constant 0 : i32
    %c0_i32_1 = arith.constant 0 : i32
    return %c0_i32, %c0_i32_0 : i32, i32
  }
  func.func @transform_5(%arg0: i32) -> (i32, i32) {
    %c0_i32 = arith.constant 0 : i32
    %c0_i32_0 = arith.constant 0 : i32
    return %arg0, %c0_i32 : i32, i32
  }
}

</mosaic_0001>

<llo_original>
// kernel: autoencoder_forward.1
$region0: #{autoencoder_forward.1}
  #allocation0 [shape = 'u32[]', space=smem, size = 0x4, offset = 0x4, fixed_abs, tag = 'smem constant byte address 0x4 - core index']
  #allocation1 [shape = 'u32[144,128]{1,0:T(1,128)}', space=vmem, size = 0x12000, scoped, tag = 'internal scratch']
  %s0 = inlined_call_operand.vmem [shape: f32[48,784], index: 0, kind: input, shape index: {}]
  %s1 = inlined_call_operand.vmem [shape: bf16[784,128], index: 1, kind: input, shape index: {}]
  %s2 = inlined_call_operand.vmem [shape: f32[1,128], index: 2, kind: input, shape index: {}]
  %s3 = inlined_call_operand.vmem [shape: bf16[128,784], index: 3, kind: input, shape index: {}]
  %s4 = inlined_call_operand.vmem [shape: f32[1,784], index: 4, kind: input, shape index: {}]
  %s5 = inlined_call_operand.vmem [shape: bf16[48,784], index: 5, kind: output, shape index: {}]
  %s6 = sld [smem:[#allocation0]]
  $region53: #{autoencoder_forward.1} parent=0
    _
  %s8 = ssub.s32 1, %s6
  %s9 = scalar_select 0, %s8, %s6
  loop: start=0, step=1, limit=4
  $region2: #{autoencoder_forward.1} parent=0 // loop_pre_header
    _
  $region3: #{autoencoder_forward.1} parent=0 // loop_header
    %s11 = sphi 0, %s15
    %p12 = scmp.ge.s32.totalorder %s11, 4
    %s21 = sphi 0, %s23
    %s24 = sphi 0, %s21
    %s25 = sphi 0, %s24
    %s41 = sphi 0, %s25
    %s45 = sphi 0, %s45
    %s47 = sphi 0, %s45
    %s48 = sphi 0, %s47
    %s62 = sphi 0, %s48
    %s66 = sphi 0, %s66
    %s68 = sphi 0, %s66
    %s69 = sphi 0, %s68
    %s83 = sphi 0, %s69
    %s87 = sphi 0, %s87
    %s89 = sphi 0, %s87
    %s90 = sphi 0, %s89
    %s104 = sphi 0, %s90
    %s108 = sphi 0, %s108
    %s110 = sphi 0, %s108
    %s111 = sphi 0, %s110
    %s125 = sphi 0, %s111
    %s131 = sphi 0, %s133
    %s134 = sphi 0, %s131
    %s135 = sphi 0, %s134
    %s151 = sphi 0, %s135
  $region4: #{autoencoder_forward.1} parent=0 // loop_header_branch
    %14 = sbr.rel (%p12) target = $region8
  $region5: #{autoencoder_forward.1} parent=0 // loop_body
    %s16 = ssub.s32 %s11, 1
    %s17 = ssub.s32 %s11, 2
    %s18 = sadd.s32 %s11, 1
    %s19 = ssub.s32 %s11, %s18
    %p20 = scmp.eq.s32.totalorder %s19, 0
    %s22 = sadd.s32 %s21, 1
    %s23 = scalar_select %p20, %s21, %s22
    %p26 = pneg %p20
    %p27 = scmp.eq.s32.totalorder %s11, 1
    %p28 = por %p26, %p27
    %p29 = scmp.ne.s32.totalorder %s21, %s24
    %p30 = scmp.eq.s32.totalorder %s11, 0
    %p31 = por %p29, %p30
    %p32 = scmp.ne.s32.totalorder %s21, %s24
    %p33 = scmp.eq.s32.totalorder %s16, 1
    %p34 = por %p32, %p33
    %p35 = scmp.ne.s32.totalorder %s24, %s25
    %p36 = scmp.eq.s32.totalorder %s16, 0
    %p37 = por %p35, %p36
    %p38 = scmp.ne.s32.totalorder %s24, %s25
    %p39 = scmp.eq.s32.totalorder %s17, 1
    %p40 = por %p38, %p39
    %p42 = scmp.ne.s32.totalorder %s25, %s41
    %p43 = scmp.eq.s32.totalorder %s17, 0
    %p44 = por %p42, %p43
    %s46 = sadd.s32 %s45, 1
    %p49 = scmp.eq.s32.totalorder %s11, 1
    %p50 = scmp.ne.s32.totalorder %s45, %s47
    %p51 = scmp.eq.s32.totalorder %s11, 0
    %p52 = por %p50, %p51
    %p53 = scmp.ne.s32.totalorder %s45, %s47
    %p54 = scmp.eq.s32.totalorder %s16, 1
    %p55 = por %p53, %p54
    %p56 = scmp.ne.s32.totalorder %s47, %s48
    %p57 = scmp.eq.s32.totalorder %s16, 0
    %p58 = por %p56, %p57
    %p59 = scmp.ne.s32.totalorder %s47, %s48
    %p60 = scmp.eq.s32.totalorder %s17, 1
    %p61 = por %p59, %p60
    %p63 = scmp.ne.s32.totalorder %s48, %s62
    %p64 = scmp.eq.s32.totalorder %s17, 0
    %p65 = por %p63, %p64
    %s67 = sadd.s32 %s66, 1
    %p70 = scmp.eq.s32.totalorder %s11, 1
    %p71 = scmp.ne.s32.totalorder %s66, %s68
    %p72 = scmp.eq.s32.totalorder %s11, 0
    %p73 = por %p71, %p72
    %p74 = scmp.ne.s32.totalorder %s66, %s68
    %p75 = scmp.eq.s32.totalorder %s16, 1
    %p76 = por %p74, %p75
    %p77 = scmp.ne.s32.totalorder %s68, %s69
    %p78 = scmp.eq.s32.totalorder %s16, 0
    %p79 = por %p77, %p78
    %p80 = scmp.ne.s32.totalorder %s68, %s69
    %p81 = scmp.eq.s32.totalorder %s17, 1
    %p82 = por %p80, %p81
    %p84 = scmp.ne.s32.totalorder %s69, %s83
    %p85 = scmp.eq.s32.totalorder %s17, 0
    %p86 = por %p84, %p85
    %s88 = sadd.s32 %s87, 1
    %p91 = scmp.eq.s32.totalorder %s11, 1
    %p92 = scmp.ne.s32.totalorder %s87, %s89
    %p93 = scmp.eq.s32.totalorder %s11, 0
    %p94 = por %p92, %p93
    %p95 = scmp.ne.s32.totalorder %s87, %s89
    %p96 = scmp.eq.s32.totalorder %s16, 1
    %p97 = por %p95, %p96
    %p98 = scmp.ne.s32.totalorder %s89, %s90
    %p99 = scmp.eq.s32.totalorder %s16, 0
    %p100 = por %p98, %p99
    %p101 = scmp.ne.s32.totalorder %s89, %s90
    %p102 = scmp.eq.s32.totalorder %s17, 1
    %p103 = por %p101, %p102
    %p105 = scmp.ne.s32.totalorder %s90, %s104
    %p106 = scmp.eq.s32.totalorder %s17, 0
    %p107 = por %p105, %p106
    %s109 = sadd.s32 %s108, 1
    %p112 = scmp.eq.s32.totalorder %s11, 1
    %p113 = scmp.ne.s32.totalorder %s108, %s110
    %p114 = scmp.eq.s32.totalorder %s11, 0
    %p115 = por %p113, %p114
    %p116 = scmp.ne.s32.totalorder %s108, %s110
    %p117 = scmp.eq.s32.totalorder %s16, 1
    %p118 = por %p116, %p117
    %p119 = scmp.ne.s32.totalorder %s110, %s111
    %p120 = scmp.eq.s32.totalorder %s16, 0
    %p121 = por %p119, %p120
    %p122 = scmp.ne.s32.totalorder %s110, %s111
    %p123 = scmp.eq.s32.totalorder %s17, 1
    %p124 = por %p122, %p123
    %p126 = scmp.ne.s32.totalorder %s111, %s125
    %p127 = scmp.eq.s32.totalorder %s17, 0
    %p128 = por %p126, %p127
    %s129 = ssub.s32 %s11, %s18
    %p130 = scmp.eq.s32.totalorder %s129, 0
    %s132 = sadd.s32 %s131, 1
    %s133 = scalar_select %p130, %s131, %s132
    %p136 = pneg %p130
    %p137 = scmp.eq.s32.totalorder %s11, 1
    %p138 = por %p136, %p137
    %p139 = scmp.ne.s32.totalorder %s131, %s134
    %p140 = scmp.eq.s32.totalorder %s11, 0
    %p141 = por %p139, %p140
    %p142 = scmp.ne.s32.totalorder %s131, %s134
    %p143 = scmp.eq.s32.totalorder %s16, 1
    %p144 = por %p142, %p143
    %p145 = scmp.ne.s32.totalorder %s134, %s135
    %p146 = scmp.eq.s32.totalorder %s16, 0
    %p147 = por %p145, %p146
    %p148 = scmp.ne.s32.totalorder %s134, %s135
    %p149 = scmp.eq.s32.totalorder %s17, 1
    %p150 = por %p148, %p149
    %p152 = scmp.ne.s32.totalorder %s135, %s151
    %p153 = scmp.eq.s32.totalorder %s17, 0
    %p154 = por %p152, %p153
    %p155 = scmp.le.s32.totalorder 1, %s11
    %p156 = scmp.lt.s32.totalorder %s11, 3
    %p157 = pnand %p155, %p156
    %p158 = pneg %p157
    // Predicated region
    $region9: #{autoencoder_forward.1} parent=5 // pred_check
      _
    $region10: #{autoencoder_forward.1} parent=5 // pred_check_branch
      %160 = sbr.rel (%p157) target = $region12
    $region11: #{autoencoder_forward.1} parent=5 // pred_region
      %s161 = ssub.s32 %s11, 1
      // Predicated region
      $region13: #{autoencoder_forward.1} parent=11 // pred_check
        %p162 = pneg %p58
      $region14: #{autoencoder_forward.1} parent=11 // pred_check_branch
        %164 = sbr.rel (%p162) target = $region16
      $region15: #{autoencoder_forward.1} parent=11 // pred_region
        _
      $region16: #{autoencoder_forward.1} parent=11 // pred_fallthru
        _
      // Predicated region
      $region17: #{autoencoder_forward.1} parent=11 // pred_check
        %p165 = pneg %p79
      $region18: #{autoencoder_forward.1} parent=11 // pred_check_branch
        %167 = sbr.rel (%p165) target = $region20
      $region19: #{autoencoder_forward.1} parent=11 // pred_region
        _
      $region20: #{autoencoder_forward.1} parent=11 // pred_fallthru
        _
      // Predicated region
      $region21: #{autoencoder_forward.1} parent=11 // pred_check
        %p168 = pneg %p100
      $region22: #{autoencoder_forward.1} parent=11 // pred_check_branch
        %170 = sbr.rel (%p168) target = $region24
      $region23: #{autoencoder_forward.1} parent=11 // pred_region
        _
      $region24: #{autoencoder_forward.1} parent=11 // pred_fallthru
        _
      // Predicated region
      $region25: #{autoencoder_forward.1} parent=11 // pred_check
        %p171 = pneg %p121
      $region26: #{autoencoder_forward.1} parent=11 // pred_check_branch
        %173 = sbr.rel (%p171) target = $region28
      $region27: #{autoencoder_forward.1} parent=11 // pred_region
        _
      $region28: #{autoencoder_forward.1} parent=11 // pred_fallthru
        _
    $region12: #{autoencoder_forward.1} parent=5 // pred_fallthru
      _
    %p174 = scmp.lt.s32.totalorder %s11, 2
    // Predicated region
    $region29: #{autoencoder_forward.1} parent=5 // pred_check
      %p175 = pneg %p174
    $region30: #{autoencoder_forward.1} parent=5 // pred_check_branch
      %177 = sbr.rel (%p175) target = $region32
    $region31: #{autoencoder_forward.1} parent=5 // pred_region
      // Predicated region
      $region33: #{autoencoder_forward.1} parent=31 // pred_check
        %p178 = pneg %p31
      $region34: #{autoencoder_forward.1} parent=31 // pred_check_branch
        %180 = sbr.rel (%p178) target = $region36
      $region35: #{autoencoder_forward.1} parent=31 // pred_region
        %s181 = smul.u32 3, %s11
        %p182 = scmp.lt.s32.totalorder %s181, 5
        %s183 = scalar_select %p182, %s181, 5
        %s184 = smul.addr %s183, 7
        %s185 = smul.addr %s184, 8
        %s186 = scalar_lea.vmem %s0, %s185
        %s187 = smul.u32 3, %s11
      $region36: #{autoencoder_forward.1} parent=31 // pred_fallthru
        _
    $region32: #{autoencoder_forward.1} parent=5 // pred_fallthru
      _
    %p188 = scmp.le.s32.totalorder 1, %s11
    %p189 = scmp.lt.s32.totalorder %s11, 3
    %p190 = pnand %p188, %p189
    %p191 = pneg %p190
    // Predicated region
    $region37: #{autoencoder_forward.1} parent=5 // pred_check
      _
    $region38: #{autoencoder_forward.1} parent=5 // pred_check_branch
      %193 = sbr.rel (%p190) target = $region40
    $region39: #{autoencoder_forward.1} parent=5 // pred_region
      %s194 = ssub.s32 %s11, 1
      %s195 = smul.u32 3, %s16
      %p196 = scmp.lt.s32.totalorder %s195, 5
      %s197 = scalar_select %p196, %s195, 5
      %s198 = smul.addr %s197, 7
      %s199 = smul.addr %s198, 8
      %s200 = scalar_lea.vmem %s0, %s199
      %p201 = pneg %p37
      %p202 = pneg %p34
      %p203 = pneg %p58
      %p204 = pneg %p55
      %p205 = pneg %p79
      %p206 = pneg %p76
      %p207 = pneg %p100
      %p208 = pneg %p97
      %p209 = pneg %p121
      %p210 = pneg %p118
      %p211 = pneg %p147
      %p212 = pneg %p144
      %s213 = smul.u32 3, %s16
      %p214 = scmp.lt.s32.totalorder %s213, 5
      %s215 = scalar_select %p214, %s213, 5
      %s216 = smul.addr %s215, 7
      %s217 = smul.addr %s216, 4
      %s218 = scalar_lea.vmem %s5, %s217
      %s219 = smul.u32 3, %s16
      %p220 = scmp.lt.s32.totalorder %s219, 5
      %s221 = scalar_select %p220, %s219, 5
      %s222 = smul.addr %s221, 7
      %s223 = smul.addr %s222, 8
      %s224 = scalar_lea.vmem %s0, %s223
      %s225 = smul.u32 3, %s16
      %s226 = smul.u32 3, %s16
      %p227 = scmp.lt.s32.totalorder %s226, 5
      %s228 = scalar_select %p227, %s226, 5
      %s229 = smul.addr %s228, 7
      %s230 = smul.addr %s229, 4
      %s231 = scalar_lea.vmem %s5, %s230
      %s232 = smul.u32 3, %s16
      %v234 = vld [vmem:[%s224] sm:$0xff]
      %v235 = vld [vmem:[%s224 + $0x8] sm:$0xff]
      %v236 = vld [vmem:[%s224 + $0x10] sm:$0xff]
      %v237 = vld [vmem:[%s224 + $0x18] sm:$0xff]
      %v238 = vld [vmem:[%s224 + $0x20] sm:$0xff]
      %v239 = vld [vmem:[%s224 + $0x28] sm:$0xff]
      %v240 = vld [vmem:[%s224 + $0x30] sm:$0xff]
      %v241 = vld [vmem:[%s224 + $0x38] sm:$0xff]
      %v242 = vld [vmem:[%s224 + $0x40] sm:$0xff]
      %v243 = vld [vmem:[%s224 + $0x48] sm:$0xff]
      %v244 = vld [vmem:[%s224 + $0x50] sm:$0xff]
      %v245 = vld [vmem:[%s224 + $0x58] sm:$0xff]
      %v246 = vld [vmem:[%s224 + $0x60] sm:$0xff]
      %v247 = vld [vmem:[%s224 + $0x68] sm:$0xff]
      %v248 = vld [vmem:[%s224 + $0x70] sm:$0xff]
      %v249 = vld [vmem:[%s224 + $0x78] sm:$0xff]
      %v250 = vld [vmem:[%s224 + $0x80] sm:$0xff]
      %v251 = vld [vmem:[%s224 + $0x88] sm:$0xff]
      %v252 = vld [vmem:[%s224 + $0x90] sm:$0xff]
      %v253 = vld [vmem:[%s224 + $0x98] sm:$0xff]
      %v254 = vld [vmem:[%s224 + $0xa0] sm:$0xff]
      %v255 = vpack.c.bf16 %v241, %v234
      %v256 = vpack.c.bf16 %v242, %v235
      %v257 = vpack.c.bf16 %v243, %v236
      %v258 = vpack.c.bf16 %v244, %v237
      %v259 = vpack.c.bf16 %v245, %v238
      %v260 = vpack.c.bf16 %v246, %v239
      %v261 = vpack.c.bf16 %v247, %v240
      %v262 = vpack.c.bf16 %v248, %v248
      %v263 = vpack.c.bf16 %v249, %v249
      %v264 = vpack.c.bf16 %v250, %v250
      %v265 = vpack.c.bf16 %v251, %v251
      %v266 = vpack.c.bf16 %v252, %v252
      %v267 = vpack.c.bf16 %v253, %v253
      %v268 = vpack.c.bf16 %v254, %v254
      %v269 = vld [vmem:[%s1] sm:$0xf]
      %v270 = vld [vmem:[%s1 + $0x4] sm:$0xf]
      %v271 = vld [vmem:[%s1 + $0x8] sm:$0xf]
      %v272 = vld [vmem:[%s1 + $0xc] sm:$0xf]
      %v273 = vld [vmem:[%s1 + $0x10] sm:$0xf]
      %v274 = vld [vmem:[%s1 + $0x14] sm:$0xf]
      %v275 = vld [vmem:[%s1 + $0x18] sm:$0xf]
      %v276 = vld [vmem:[%s1 + $0x1c] sm:$0xf]
      %v277 = vld [vmem:[%s1 + $0x20] sm:$0xf]
      %v278 = vld [vmem:[%s1 + $0x24] sm:$0xf]
      %v279 = vld [vmem:[%s1 + $0x28] sm:$0xf]
      %v280 = vld [vmem:[%s1 + $0x2c] sm:$0xf]
      %v281 = vld [vmem:[%s1 + $0x30] sm:$0xf]
      %v282 = vld [vmem:[%s1 + $0x34] sm:$0xf]
      %v283 = vld [vmem:[%s1 + $0x38] sm:$0xf]
      %v284 = vld [vmem:[%s1 + $0x3c] sm:$0xf]
      %v285 = vld [vmem:[%s1 + $0x40] sm:$0xf]
      %v286 = vld [vmem:[%s1 + $0x44] sm:$0xf]
      %v287 = vld [vmem:[%s1 + $0x48] sm:$0xf]
      %v288 = vld [vmem:[%s1 + $0x4c] sm:$0xf]
      %v289 = vld [vmem:[%s1 + $0x50] sm:$0xf]
      %v290 = vld [vmem:[%s1 + $0x54] sm:$0xf]
      %v291 = vld [vmem:[%s1 + $0x58] sm:$0xf]
      %v292 = vld [vmem:[%s1 + $0x5c] sm:$0xf]
      %v293 = vld [vmem:[%s1 + $0x60] sm:$0xf]
      %v294 = vld [vmem:[%s1 + $0x64] sm:$0xf]
      %v295 = vld [vmem:[%s1 + $0x68] sm:$0xf]
      %v296 = vld [vmem:[%s1 + $0x6c] sm:$0xf]
      %v297 = vld [vmem:[%s1 + $0x70] sm:$0xf]
      %v298 = vld [vmem:[%s1 + $0x74] sm:$0xf]
      %v299 = vld [vmem:[%s1 + $0x78] sm:$0xf]
      %v300 = vld [vmem:[%s1 + $0x7c] sm:$0xf]
      %v301 = vld [vmem:[%s1 + $0x80] sm:$0xf]
      %v302 = vld [vmem:[%s1 + $0x84] sm:$0xf]
      %v303 = vld [vmem:[%s1 + $0x88] sm:$0xf]
      %v304 = vld [vmem:[%s1 + $0x8c] sm:$0xf]
      %v305 = vld [vmem:[%s1 + $0x90] sm:$0xf]
      %v306 = vld [vmem:[%s1 + $0x94] sm:$0xf]
      %v307 = vld [vmem:[%s1 + $0x98] sm:$0xf]
      %v308 = vld [vmem:[%s1 + $0x9c] sm:$0xf]
      %v309 = vld [vmem:[%s1 + $0xa0] sm:$0xf]
      %v310 = vld [vmem:[%s1 + $0xa4] sm:$0xf]
      %v311 = vld [vmem:[%s1 + $0xa8] sm:$0xf]
      %v312 = vld [vmem:[%s1 + $0xac] sm:$0xf]
      %v313 = vld [vmem:[%s1 + $0xb0] sm:$0xf]
      %v314 = vld [vmem:[%s1 + $0xb4] sm:$0xf]
      %v315 = vld [vmem:[%s1 + $0xb8] sm:$0xf]
      %v316 = vld [vmem:[%s1 + $0xbc] sm:$0xf]
      %v317 = vld [vmem:[%s1 + $0xc0] sm:$0xf]
      %v318 = vld [vmem:[%s1 + $0xc4] sm:$0xf]
      %v319 = vld [vmem:[%s1 + $0xc8] sm:$0xf]
      %v320 = vld [vmem:[%s1 + $0xcc] sm:$0xf]
      %v321 = vld [vmem:[%s1 + $0xd0] sm:$0xf]
      %v322 = vld [vmem:[%s1 + $0xd4] sm:$0xf]
      %v323 = vld [vmem:[%s1 + $0xd8] sm:$0xf]
      %v324 = vld [vmem:[%s1 + $0xdc] sm:$0xf]
      %v325 = vld [vmem:[%s1 + $0xe0] sm:$0xf]
      %v326 = vld [vmem:[%s1 + $0xe4] sm:$0xf]
      %v327 = vld [vmem:[%s1 + $0xe8] sm:$0xf]
      %v328 = vld [vmem:[%s1 + $0xec] sm:$0xf]
      %v329 = vld [vmem:[%s1 + $0xf0] sm:$0xf]
      %v330 = vld [vmem:[%s1 + $0xf4] sm:$0xf]
      %v331 = vld [vmem:[%s1 + $0xf8] sm:$0xf]
      %v332 = vld [vmem:[%s1 + $0xfc] sm:$0xf]
      %v333 = vld [vmem:[%s1 + $0x100] sm:$0xf]
      %v334 = vld [vmem:[%s1 + $0x104] sm:$0xf]
      %v335 = vld [vmem:[%s1 + $0x108] sm:$0xf]
      %v336 = vld [vmem:[%s1 + $0x10c] sm:$0xf]
      %v337 = vld [vmem:[%s1 + $0x110] sm:$0xf]
      %v338 = vld [vmem:[%s1 + $0x114] sm:$0xf]
      %v339 = vld [vmem:[%s1 + $0x118] sm:$0xf]
      %v340 = vld [vmem:[%s1 + $0x11c] sm:$0xf]
      %v341 = vld [vmem:[%s1 + $0x120] sm:$0xf]
      %v342 = vld [vmem:[%s1 + $0x124] sm:$0xf]
      %v343 = vld [vmem:[%s1 + $0x128] sm:$0xf]
      %v344 = vld [vmem:[%s1 + $0x12c] sm:$0xf]
      %v345 = vld [vmem:[%s1 + $0x130] sm:$0xf]
      %v346 = vld [vmem:[%s1 + $0x134] sm:$0xf]
      %v347 = vld [vmem:[%s1 + $0x138] sm:$0xf]
      %v348 = vld [vmem:[%s1 + $0x13c] sm:$0xf]
      %v349 = vld [vmem:[%s1 + $0x140] sm:$0xf]
      %v350 = vld [vmem:[%s1 + $0x144] sm:$0xf]
      %v351 = vld [vmem:[%s1 + $0x148] sm:$0xf]
      %v352 = vld [vmem:[%s1 + $0x14c] sm:$0xf]
      %v353 = vld [vmem:[%s1 + $0x150] sm:$0xf]
      %v354 = vld [vmem:[%s1 + $0x154] sm:$0xf]
      %v355 = vld [vmem:[%s1 + $0x158] sm:$0xf]
      %v356 = vld [vmem:[%s1 + $0x15c] sm:$0xf]
      %v357 = vld [vmem:[%s1 + $0x160] sm:$0xf]
      %v358 = vld [vmem:[%s1 + $0x164] sm:$0xf]
      %v359 = vld [vmem:[%s1 + $0x168] sm:$0xf]
      %v360 = vld [vmem:[%s1 + $0x16c] sm:$0xf]
      %v361 = vld [vmem:[%s1 + $0x170] sm:$0xf]
      %v362 = vld [vmem:[%s1 + $0x174] sm:$0xf]
      %v363 = vld [vmem:[%s1 + $0x178] sm:$0xf]
      %v364 = vld [vmem:[%s1 + $0x17c] sm:$0xf]
      %v365 = vld [vmem:[%s1 + $0x180] sm:$0xf]
      %v366 = vld [vmem:[%s1 + $0x184] sm:$0xf]
      %v367 = vld [vmem:[%s2] sm:$0x1]
      %v369 = vlaneseq
      %v370 = vshrl.u32 %v369, 7
      %v371 = vsub.s32 0, %v370
      %v372 = vrot.slane %v367, %v371
      %v472 = vunpack.c.l.b16 %v269
      %v473 = vunpack.c.l.b16 %v270
      %v474 = vunpack.c.l.b16 %v271
      %v475 = vunpack.c.l.b16 %v272
      %v476 = vunpack.c.l.b16 %v273
      %v477 = vunpack.c.l.b16 %v274
      %v478 = vunpack.c.l.b16 %v275
      %v479 = vunpack.c.l.b16 %v276
      %v480 = vunpack.c.l.b16 %v277
      %v481 = vunpack.c.l.b16 %v278
      %v482 = vunpack.c.l.b16 %v279
      %v483 = vunpack.c.l.b16 %v280
      %v484 = vunpack.c.l.b16 %v281
      %v485 = vunpack.c.l.b16 %v282
      %v486 = vunpack.c.l.b16 %v283
      %v487 = vunpack.c.l.b16 %v284
      %v488 = vunpack.c.l.b16 %v285
      %v489 = vunpack.c.l.b16 %v286
      %v490 = vunpack.c.l.b16 %v287
      %v491 = vunpack.c.l.b16 %v288
      %v492 = vunpack.c.l.b16 %v289
      %v493 = vunpack.c.l.b16 %v290
      %v494 = vunpack.c.l.b16 %v291
      %v495 = vunpack.c.l.b16 %v292
      %v496 = vunpack.c.l.b16 %v293
      %v497 = vunpack.c.l.b16 %v294
      %v498 = vunpack.c.l.b16 %v295
      %v499 = vunpack.c.l.b16 %v296
      %v500 = vunpack.c.l.b16 %v297
      %v501 = vunpack.c.l.b16 %v298
      %v502 = vunpack.c.l.b16 %v299
      %v503 = vunpack.c.l.b16 %v300
      %v504 = vunpack.c.l.b16 %v301
      %v505 = vunpack.c.l.b16 %v302
      %v506 = vunpack.c.l.b16 %v303
      %v507 = vunpack.c.l.b16 %v304
      %v508 = vunpack.c.l.b16 %v305
      %v509 = vunpack.c.l.b16 %v306
      %v510 = vunpack.c.l.b16 %v307
      %v511 = vunpack.c.l.b16 %v308
      %v512 = vunpack.c.l.b16 %v309
      %v513 = vunpack.c.l.b16 %v310
      %v514 = vunpack.c.l.b16 %v311
      %v515 = vunpack.c.l.b16 %v312
      %v516 = vunpack.c.l.b16 %v313
      %v517 = vunpack.c.l.b16 %v314
      %v518 = vunpack.c.l.b16 %v315
      %v519 = vunpack.c.l.b16 %v316
      %v520 = vunpack.c.l.b16 %v317
      %v521 = vunpack.c.l.b16 %v318
      %v522 = vunpack.c.l.b16 %v319
      %v523 = vunpack.c.l.b16 %v320
      %v524 = vunpack.c.l.b16 %v321
      %v525 = vunpack.c.l.b16 %v322
      %v526 = vunpack.c.l.b16 %v323
      %v527 = vunpack.c.l.b16 %v324
      %v528 = vunpack.c.l.b16 %v325
      %v529 = vunpack.c.l.b16 %v326
      %v530 = vunpack.c.l.b16 %v327
      %v531 = vunpack.c.l.b16 %v328
      %v532 = vunpack.c.l.b16 %v329
      %v533 = vunpack.c.l.b16 %v330
      %v534 = vunpack.c.l.b16 %v331
      %v535 = vunpack.c.l.b16 %v332
      %v536 = vunpack.c.l.b16 %v333
      %v537 = vunpack.c.l.b16 %v334
      %v538 = vunpack.c.l.b16 %v335
      %v539 = vunpack.c.l.b16 %v336
      %v540 = vunpack.c.l.b16 %v337
      %v541 = vunpack.c.l.b16 %v338
      %v542 = vunpack.c.l.b16 %v339
      %v543 = vunpack.c.l.b16 %v340
      %v544 = vunpack.c.l.b16 %v341
      %v545 = vunpack.c.l.b16 %v342
      %v546 = vunpack.c.l.b16 %v343
      %v547 = vunpack.c.l.b16 %v344
      %v548 = vunpack.c.l.b16 %v345
      %v549 = vunpack.c.l.b16 %v346
      %v550 = vunpack.c.l.b16 %v347
      %v551 = vunpack.c.l.b16 %v348
      %v552 = vunpack.c.l.b16 %v349
      %v553 = vunpack.c.l.b16 %v350
      %v554 = vunpack.c.l.b16 %v351
      %v555 = vunpack.c.l.b16 %v352
      %v556 = vunpack.c.l.b16 %v353
      %v557 = vunpack.c.l.b16 %v354
      %v558 = vunpack.c.l.b16 %v355
      %v559 = vunpack.c.l.b16 %v356
      %v560 = vunpack.c.l.b16 %v357
      %v561 = vunpack.c.l.b16 %v358
      %v562 = vunpack.c.l.b16 %v359
      %v563 = vunpack.c.l.b16 %v360
      %v564 = vunpack.c.l.b16 %v361
      %v565 = vunpack.c.l.b16 %v362
      %v566 = vunpack.c.l.b16 %v363
      %v567 = vunpack.c.l.b16 %v364
      %v568 = vunpack.c.l.b16 %v365
      %v569 = vunpack.c.l.b16 %v366
      %v570 = vpack.c.b16 %v473, %v472
      %v571 = vpack.c.b16 %v475, %v474
      %v572 = vpack.c.b16 %v477, %v476
      %v573 = vpack.c.b16 %v479, %v478
      %v574 = vpack.c.b16 %v481, %v480
      %v575 = vpack.c.b16 %v483, %v482
      %v576 = vpack.c.b16 %v485, %v484
      %v577 = vpack.c.b16 %v487, %v486
      %v578 = vpack.c.b16 %v489, %v488
      %v579 = vpack.c.b16 %v491, %v490
      %v580 = vpack.c.b16 %v493, %v492
      %v581 = vpack.c.b16 %v495, %v494
      %v582 = vpack.c.b16 %v497, %v496
      %v583 = vpack.c.b16 %v499, %v498
      %v584 = vpack.c.b16 %v501, %v500
      %v585 = vpack.c.b16 %v503, %v502
      %v586 = vpack.c.b16 %v505, %v504
      %v587 = vpack.c.b16 %v507, %v506
      %v588 = vpack.c.b16 %v509, %v508
      %v589 = vpack.c.b16 %v511, %v510
      %v590 = vpack.c.b16 %v513, %v512
      %v591 = vpack.c.b16 %v515, %v514
      %v592 = vpack.c.b16 %v517, %v516
      %v593 = vpack.c.b16 %v519, %v518
      %v594 = vpack.c.b16 %v521, %v520
      %v595 = vpack.c.b16 %v523, %v522
      %v596 = vpack.c.b16 %v525, %v524
      %v597 = vpack.c.b16 %v527, %v526
      %v598 = vpack.c.b16 %v529, %v528
      %v599 = vpack.c.b16 %v531, %v530
      %v600 = vpack.c.b16 %v533, %v532
      %v601 = vpack.c.b16 %v535, %v534
      %v602 = vpack.c.b16 %v537, %v536
      %v603 = vpack.c.b16 %v539, %v538
      %v604 = vpack.c.b16 %v541, %v540
      %v605 = vpack.c.b16 %v543, %v542
      %v606 = vpack.c.b16 %v545, %v544
      %v607 = vpack.c.b16 %v547, %v546
      %v608 = vpack.c.b16 %v549, %v548
      %v609 = vpack.c.b16 %v551, %v550
      %v610 = vpack.c.b16 %v553, %v552
      %v611 = vpack.c.b16 %v555, %v554
      %v612 = vpack.c.b16 %v557, %v556
      %v613 = vpack.c.b16 %v559, %v558
      %v614 = vpack.c.b16 %v561, %v560
      %v615 = vpack.c.b16 %v563, %v562
      %v616 = vpack.c.b16 %v565, %v564
      %v617 = vpack.c.b16 %v567, %v566
      %v618 = vpack.c.b16 %v569, %v568
      %vm668 = vcmask 130048
      %v670 = vsel %vm668, %v261, 0
      %v673 = vsel %vm668, %v268, 0
      %675 = vmatprep.subr.bf16.mxu0 0
      %676 = vmatpush1.bf16.msra.mxu0 %v577
      %677 = vmatprep.subr.bf16.mxu0 0
      %678 = vmatpush1.bf16.msra.mxu0 %v576
      %679 = vmatprep.subr.bf16.mxu0 0
      %680 = vmatpush1.bf16.msra.mxu0 %v575
      %681 = vmatprep.subr.bf16.mxu0 0
      %682 = vmatpush1.bf16.msra.mxu0 %v574
      %683 = vmatprep.subr.bf16.mxu0 0
      %684 = vmatpush1.bf16.msra.mxu0 %v573
      %685 = vmatprep.subr.bf16.mxu0 0
      %686 = vmatpush1.bf16.msra.mxu0 %v572
      %687 = vmatprep.subr.bf16.mxu0 0
      %688 = vmatpush1.bf16.msra.mxu0 %v571
      %689 = vmatprep.subr.bf16.mxu0 0
      %690 = vmatpush1.bf16.msra.mxu0 %v570
      %691 = vmatprep.subr.bf16.mxu0 0
      %692 = vmatpush2.bf16.msra.mxu0 %v585
      %693 = vmatprep.subr.bf16.mxu0 0
      %694 = vmatpush2.bf16.msra.mxu0 %v584
      %695 = vmatprep.subr.bf16.mxu0 0
      %696 = vmatpush2.bf16.msra.mxu0 %v583
      %697 = vmatprep.subr.bf16.mxu0 0
      %698 = vmatpush2.bf16.msra.mxu0 %v582
      %699 = vmatprep.subr.bf16.mxu0 0
      %700 = vmatpush2.bf16.msra.mxu0 %v581
      %701 = vmatprep.subr.bf16.mxu0 0
      %702 = vmatpush2.bf16.msra.mxu0 %v580
      %703 = vmatprep.subr.bf16.mxu0 0
      %704 = vmatpush2.bf16.msra.mxu0 %v579
      %705 = vmatprep.subr.bf16.mxu0 0
      %706 = vmatpush2.bf16.msra.mxu0 %v578
      %707 = vmatprep.mubr.bf16.mxu0 %v256
      %708 = vmatmul.mubr.bf16.gmra.mxu0 %v255
      %v709 = vpop.f32.mrf.mxu0
      %v710 = vadd.f32 %v372, %v709
      %v711 = vpop.f32.mrf.mxu0
      %v712 = vpop.f32.mrf.mxu0
      %v713 = vadd.f32 %v372, %v712
      %v714 = vpop.f32.mrf.mxu0
      %715 = vmatprep.mubr.bf16.mxu0 %v263
      %716 = vmatmul.mubr.bf16.gmra.mxu0 %v262
      %v717 = vpop.f32.mrf.mxu0
      %v718 = vadd.f32 %v372, %v717
      %v719 = vpop.f32.mrf.mxu0
      %v720 = vpop.f32.mrf.mxu0
      %v721 = vpop.f32.mrf.mxu0
      %722 = vdwg.mxu0
      %723 = vmatprep.subr.bf16.mxu0 0
      %724 = vmatpush1.bf16.msra.mxu0 %v593
      %725 = vmatprep.subr.bf16.mxu0 0
      %726 = vmatpush1.bf16.msra.mxu0 %v592
      %727 = vmatprep.subr.bf16.mxu0 0
      %728 = vmatpush1.bf16.msra.mxu0 %v591
      %729 = vmatprep.subr.bf16.mxu0 0
      %730 = vmatpush1.bf16.msra.mxu0 %v590
      %731 = vmatprep.subr.bf16.mxu0 0
      %732 = vmatpush1.bf16.msra.mxu0 %v589
      %733 = vmatprep.subr.bf16.mxu0 0
      %734 = vmatpush1.bf16.msra.mxu0 %v588
      %735 = vmatprep.subr.bf16.mxu0 0
      %736 = vmatpush1.bf16.msra.mxu0 %v587
      %737 = vmatprep.subr.bf16.mxu0 0
      %738 = vmatpush1.bf16.msra.mxu0 %v586
      %739 = vmatprep.subr.bf16.mxu0 0
      %740 = vmatpush2.bf16.msra.mxu0 %v601
      %741 = vmatprep.subr.bf16.mxu0 0
      %742 = vmatpush2.bf16.msra.mxu0 %v600
      %743 = vmatprep.subr.bf16.mxu0 0
      %744 = vmatpush2.bf16.msra.mxu0 %v599
      %745 = vmatprep.subr.bf16.mxu0 0
      %746 = vmatpush2.bf16.msra.mxu0 %v598
      %747 = vmatprep.subr.bf16.mxu0 0
      %748 = vmatpush2.bf16.msra.mxu0 %v597
      %749 = vmatprep.subr.bf16.mxu0 0
      %750 = vmatpush2.bf16.msra.mxu0 %v596
      %751 = vmatprep.subr.bf16.mxu0 0
      %752 = vmatpush2.bf16.msra.mxu0 %v595
      %753 = vmatprep.subr.bf16.mxu0 0
      %754 = vmatpush2.bf16.msra.mxu0 %v594
      %755 = vmatprep.mubr.bf16.mxu0 %v258
      %756 = vmatmul.mubr.bf16.gmra.mxu0 %v257
      %v757 = vpop.f32.mrf.mxu0
      %v758 = vadd.f32 %v710, %v757
      %v759 = vpop.f32.mrf.mxu0
      %v760 = vpop.f32.mrf.mxu0
      %v761 = vadd.f32 %v713, %v760
      %v762 = vpop.f32.mrf.mxu0
      %763 = vmatprep.mubr.bf16.mxu0 %v265
      %764 = vmatmul.mubr.bf16.gmra.mxu0 %v264
      %v765 = vpop.f32.mrf.mxu0
      %v766 = vadd.f32 %v718, %v765
      %v767 = vpop.f32.mrf.mxu0
      %v768 = vpop.f32.mrf.mxu0
      %v769 = vpop.f32.mrf.mxu0
      %770 = vdwg.mxu0
      %771 = vmatprep.subr.bf16.mxu0 0
      %772 = vmatpush1.bf16.msra.mxu0 %v609
      %773 = vmatprep.subr.bf16.mxu0 0
      %774 = vmatpush1.bf16.msra.mxu0 %v608
      %775 = vmatprep.subr.bf16.mxu0 0
      %776 = vmatpush1.bf16.msra.mxu0 %v607
      %777 = vmatprep.subr.bf16.mxu0 0
      %778 = vmatpush1.bf16.msra.mxu0 %v606
      %779 = vmatprep.subr.bf16.mxu0 0
      %780 = vmatpush1.bf16.msra.mxu0 %v605
      %781 = vmatprep.subr.bf16.mxu0 0
      %782 = vmatpush1.bf16.msra.mxu0 %v604
      %783 = vmatprep.subr.bf16.mxu0 0
      %784 = vmatpush1.bf16.msra.mxu0 %v603
      %785 = vmatprep.subr.bf16.mxu0 0
      %786 = vmatpush1.bf16.msra.mxu0 %v602
      %787 = vmatprep.subr.bf16.mxu0 0
      %788 = vmatpush2.bf16.msra.mxu0 %v617
      %789 = vmatprep.subr.bf16.mxu0 0
      %790 = vmatpush2.bf16.msra.mxu0 %v616
      %791 = vmatprep.subr.bf16.mxu0 0
      %792 = vmatpush2.bf16.msra.mxu0 %v615
      %793 = vmatprep.subr.bf16.mxu0 0
      %794 = vmatpush2.bf16.msra.mxu0 %v614
      %795 = vmatprep.subr.bf16.mxu0 0
      %796 = vmatpush2.bf16.msra.mxu0 %v613
      %797 = vmatprep.subr.bf16.mxu0 0
      %798 = vmatpush2.bf16.msra.mxu0 %v612
      %799 = vmatprep.subr.bf16.mxu0 0
      %800 = vmatpush2.bf16.msra.mxu0 %v611
      %801 = vmatprep.subr.bf16.mxu0 0
      %802 = vmatpush2.bf16.msra.mxu0 %v610
      %803 = vmatprep.mubr.bf16.mxu0 %v260
      %804 = vmatmul.mubr.bf16.gmra.mxu0 %v259
      %v805 = vpop.f32.mrf.mxu0
      %v806 = vadd.f32 %v758, %v805
      %v807 = vpop.f32.mrf.mxu0
      %v808 = vpop.f32.mrf.mxu0
      %v809 = vadd.f32 %v761, %v808
      %v810 = vpop.f32.mrf.mxu0
      %811 = vmatprep.mubr.bf16.mxu0 %v267
      %812 = vmatmul.mubr.bf16.gmra.mxu0 %v266
      %v813 = vpop.f32.mrf.mxu0
      %v814 = vadd.f32 %v766, %v813
      %v815 = vpop.f32.mrf.mxu0
      %v816 = vpop.f32.mrf.mxu0
      %v817 = vpop.f32.mrf.mxu0
      %818 = vdwg.mxu0
      %819 = vmatprep.subr.bf16.mxu0 0
      %820 = vmatpush1.bf16.msra.mxu0 0
      %821 = vmatprep.subr.bf16.mxu0 0
      %822 = vmatpush1.bf16.msra.mxu0 0
      %823 = vmatprep.subr.bf16.mxu0 0
      %824 = vmatpush1.bf16.msra.mxu0 0
      %825 = vmatprep.subr.bf16.mxu0 0
      %826 = vmatpush1.bf16.msra.mxu0 0
      %827 = vmatprep.subr.bf16.mxu0 0
      %828 = vmatpush1.bf16.msra.mxu0 0
      %829 = vmatprep.subr.bf16.mxu0 0
      %830 = vmatpush1.bf16.msra.mxu0 0
      %831 = vmatprep.subr.bf16.mxu0 0
      %832 = vmatpush1.bf16.msra.mxu0 0
      %833 = vmatprep.subr.bf16.mxu0 0
      %834 = vmatpush1.bf16.msra.mxu0 %v618
      %835 = vmatprep.subr.bf16.mxu0 0
      %836 = vmatpush2.bf16.msra.mxu0 0
      %837 = vmatprep.subr.bf16.mxu0 0
      %838 = vmatpush2.bf16.msra.mxu0 0
      %839 = vmatprep.subr.bf16.mxu0 0
      %840 = vmatpush2.bf16.msra.mxu0 0
      %841 = vmatprep.subr.bf16.mxu0 0
      %842 = vmatpush2.bf16.msra.mxu0 0
      %843 = vmatprep.subr.bf16.mxu0 0
      %844 = vmatpush2.bf16.msra.mxu0 0
      %845 = vmatprep.subr.bf16.mxu0 0
      %846 = vmatpush2.bf16.msra.mxu0 0
      %847 = vmatprep.subr.bf16.mxu0 0
      %848 = vmatpush2.bf16.msra.mxu0 0
      %849 = vmatprep.subr.bf16.mxu0 0
      %850 = vmatpush2.bf16.msra.mxu0 0
      %851 = vmatprep.mubr.bf16.mxu0 0
      %852 = vmatmul.mubr.bf16.gmra.mxu0 %v670
      %v853 = vpop.f32.mrf.mxu0
      %v854 = vadd.f32 %v806, %v853
      %v855 = vpop.f32.mrf.mxu0
      %v856 = vpop.f32.mrf.mxu0
      %v857 = vadd.f32 %v809, %v856
      %v858 = vpop.f32.mrf.mxu0
      %859 = vmatprep.mubr.bf16.mxu0 0
      %860 = vmatmul.mubr.bf16.gmra.mxu0 %v673
      %v861 = vpop.f32.mrf.mxu0
      %v862 = vadd.f32 %v814, %v861
      %v863 = vpop.f32.mrf.mxu0
      %v864 = vpop.f32.mrf.mxu0
      %v865 = vpop.f32.mrf.mxu0
      %866 = vdwg.mxu0
      %v867 = vsub.f32 0.0, %v854
      %v868 = vsub.f32 0.0, %v857
      %v869 = vsub.f32 0.0, %v862
      %v870 = vmul.f32 %v867, 1.442695
      %v871 = vpow.pop %v870
      %v872 = vmul.f32 %v868, 1.442695
      %v873 = vpow.pop %v872
      %v874 = vmul.f32 %v869, 1.442695
      %v875 = vpow.pop %v874
      %v876 = vadd.f32 %v871, 1.0
      %v877 = vadd.f32 %v873, 1.0
      %v878 = vadd.f32 %v875, 1.0
      %v879 = vrcp.pop %v876
      %v880 = vrcp.pop %v877
      %v881 = vrcp.pop %v878
      %v882 = vpack.c.bf16 %v880, %v879
      %v883 = vpack.c.bf16 %v881, %v881
      %v884 = vld [vmem:[%s3] sm:$0xff]
      %v885 = vld [vmem:[%s3 + $0x8] sm:$0xff]
      %v886 = vld [vmem:[%s3 + $0x10] sm:$0xff]
      %v887 = vld [vmem:[%s3 + $0x18] sm:$0xf]
      %v888 = vld [vmem:[%s3 + $0x1c] sm:$0xff]
      %v889 = vld [vmem:[%s3 + $0x24] sm:$0xff]
      %v890 = vld [vmem:[%s3 + $0x2c] sm:$0xff]
      %v891 = vld [vmem:[%s3 + $0x34] sm:$0xf]
      %v892 = vld [vmem:[%s3 + $0x38] sm:$0xff]
      %v893 = vld [vmem:[%s3 + $0x40] sm:$0xff]
      %v894 = vld [vmem:[%s3 + $0x48] sm:$0xff]
      %v895 = vld [vmem:[%s3 + $0x50] sm:$0xf]
      %v896 = vld [vmem:[%s3 + $0x54] sm:$0xff]
      %v897 = vld [vmem:[%s3 + $0x5c] sm:$0xff]
      %v898 = vld [vmem:[%s3 + $0x64] sm:$0xff]
      %v899 = vld [vmem:[%s3 + $0x6c] sm:$0xf]
      %v900 = vld [vmem:[%s3 + $0x70] sm:$0xff]
      %v901 = vld [vmem:[%s3 + $0x78] sm:$0xff]
      %v902 = vld [vmem:[%s3 + $0x80] sm:$0xff]
      %v903 = vld [vmem:[%s3 + $0x88] sm:$0xf]
      %v904 = vld [vmem:[%s3 + $0x8c] sm:$0xff]
      %v905 = vld [vmem:[%s3 + $0x94] sm:$0xff]
      %v906 = vld [vmem:[%s3 + $0x9c] sm:$0xff]
      %v907 = vld [vmem:[%s3 + $0xa4] sm:$0xf]
      %v908 = vld [vmem:[%s3 + $0xa8] sm:$0xff]
      %v909 = vld [vmem:[%s3 + $0xb0] sm:$0xff]
      %v910 = vld [vmem:[%s3 + $0xb8] sm:$0xff]
      %v911 = vld [vmem:[%s3 + $0xc0] sm:$0xf]
      %v912 = vld [vmem:[%s3 + $0xc4] sm:$0xff]
      %v913 = vld [vmem:[%s3 + $0xcc] sm:$0xff]
      %v914 = vld [vmem:[%s3 + $0xd4] sm:$0xff]
      %v915 = vld [vmem:[%s3 + $0xdc] sm:$0xf]
      %v916 = vld [vmem:[%s3 + $0xe0] sm:$0xff]
      %v917 = vld [vmem:[%s3 + $0xe8] sm:$0xff]
      %v918 = vld [vmem:[%s3 + $0xf0] sm:$0xff]
      %v919 = vld [vmem:[%s3 + $0xf8] sm:$0xf]
      %v920 = vld [vmem:[%s3 + $0xfc] sm:$0xff]
      %v921 = vld [vmem:[%s3 + $0x104] sm:$0xff]
      %v922 = vld [vmem:[%s3 + $0x10c] sm:$0xff]
      %v923 = vld [vmem:[%s3 + $0x114] sm:$0xf]
      %v924 = vld [vmem:[%s3 + $0x118] sm:$0xff]
      %v925 = vld [vmem:[%s3 + $0x120] sm:$0xff]
      %v926 = vld [vmem:[%s3 + $0x128] sm:$0xff]
      %v927 = vld [vmem:[%s3 + $0x130] sm:$0xf]
      %v928 = vld [vmem:[%s3 + $0x134] sm:$0xff]
      %v929 = vld [vmem:[%s3 + $0x13c] sm:$0xff]
      %v930 = vld [vmem:[%s3 + $0x144] sm:$0xff]
      %v931 = vld [vmem:[%s3 + $0x14c] sm:$0xf]
      %v932 = vld [vmem:[%s3 + $0x150] sm:$0xff]
      %v933 = vld [vmem:[%s3 + $0x158] sm:$0xff]
      %v934 = vld [vmem:[%s3 + $0x160] sm:$0xff]
      %v935 = vld [vmem:[%s3 + $0x168] sm:$0xf]
      %v936 = vld [vmem:[%s3 + $0x16c] sm:$0xff]
      %v937 = vld [vmem:[%s3 + $0x174] sm:$0xff]
      %v938 = vld [vmem:[%s3 + $0x17c] sm:$0xff]
      %v939 = vld [vmem:[%s3 + $0x184] sm:$0xf]
      %v940 = vld [vmem:[%s3 + $0x188] sm:$0xff]
      %v941 = vld [vmem:[%s3 + $0x190] sm:$0xff]
      %v942 = vld [vmem:[%s3 + $0x198] sm:$0xff]
      %v943 = vld [vmem:[%s3 + $0x1a0] sm:$0xf]
      %v944 = vld [vmem:[%s3 + $0x1a4] sm:$0xff]
      %v945 = vld [vmem:[%s3 + $0x1ac] sm:$0xff]
      %v946 = vld [vmem:[%s3 + $0x1b4] sm:$0xff]
      %v947 = vld [vmem:[%s3 + $0x1bc] sm:$0xf]
      %v948 = vld [vmem:[%s4] sm:$0x7f]
      %v950 = vlaneseq
      %v951 = vshrl.u32 %v950, 7
      %v952 = vsub.s32 0, %v951
      %v953 = vrot.slane %v948, %v952
      %v954 = vlaneseq
      %v955 = vshrl.u32 %v954, 7
      %v956 = vsub.s32 1, %v955
      %v957 = vrot.slane %v948, %v956
      %v958 = vlaneseq
      %v959 = vshrl.u32 %v958, 7
      %v960 = vsub.s32 2, %v959
      %v961 = vrot.slane %v948, %v960
      %v962 = vlaneseq
      %v963 = vshrl.u32 %v962, 7
      %v964 = vsub.s32 3, %v963
      %v965 = vrot.slane %v948, %v964
      %v966 = vlaneseq
      %v967 = vshrl.u32 %v966, 7
      %v968 = vsub.s32 4, %v967
      %v969 = vrot.slane %v948, %v968
      %v970 = vlaneseq
      %v971 = vshrl.u32 %v970, 7
      %v972 = vsub.s32 5, %v971
      %v973 = vrot.slane %v948, %v972
      %v974 = vlaneseq
      %v975 = vshrl.u32 %v974, 7
      %v976 = vsub.s32 6, %v975
      %v977 = vrot.slane %v948, %v976
      %v1049 = vunpack.c.l.b16 %v884
      %v1050 = vunpack.c.h.b16 %v884
      %v1051 = vunpack.c.l.b16 %v885
      %v1052 = vunpack.c.h.b16 %v885
      %v1053 = vunpack.c.l.b16 %v886
      %v1054 = vunpack.c.h.b16 %v886
      %v1055 = vunpack.c.l.b16 %v887
      %v1056 = vunpack.c.l.b16 %v888
      %v1057 = vunpack.c.h.b16 %v888
      %v1058 = vunpack.c.l.b16 %v889
      %v1059 = vunpack.c.h.b16 %v889
      %v1060 = vunpack.c.l.b16 %v890
      %v1061 = vunpack.c.h.b16 %v890
      %v1062 = vunpack.c.l.b16 %v891
      %v1063 = vunpack.c.l.b16 %v892
      %v1064 = vunpack.c.h.b16 %v892
      %v1065 = vunpack.c.l.b16 %v893
      %v1066 = vunpack.c.h.b16 %v893
      %v1067 = vunpack.c.l.b16 %v894
      %v1068 = vunpack.c.h.b16 %v894
      %v1069 = vunpack.c.l.b16 %v895
      %v1070 = vunpack.c.l.b16 %v896
      %v1071 = vunpack.c.h.b16 %v896
      %v1072 = vunpack.c.l.b16 %v897
      %v1073 = vunpack.c.h.b16 %v897
      %v1074 = vunpack.c.l.b16 %v898
      %v1075 = vunpack.c.h.b16 %v898
      %v1076 = vunpack.c.l.b16 %v899
      %v1077 = vunpack.c.l.b16 %v900
      %v1078 = vunpack.c.h.b16 %v900
      %v1079 = vunpack.c.l.b16 %v901
      %v1080 = vunpack.c.h.b16 %v901
      %v1081 = vunpack.c.l.b16 %v902
      %v1082 = vunpack.c.h.b16 %v902
      %v1083 = vunpack.c.l.b16 %v903
      %v1084 = vunpack.c.l.b16 %v904
      %v1085 = vunpack.c.h.b16 %v904
      %v1086 = vunpack.c.l.b16 %v905
      %v1087 = vunpack.c.h.b16 %v905
      %v1088 = vunpack.c.l.b16 %v906
      %v1089 = vunpack.c.h.b16 %v906
      %v1090 = vunpack.c.l.b16 %v907
      %v1091 = vunpack.c.l.b16 %v908
      %v1092 = vunpack.c.h.b16 %v908
      %v1093 = vunpack.c.l.b16 %v909
      %v1094 = vunpack.c.h.b16 %v909
      %v1095 = vunpack.c.l.b16 %v910
      %v1096 = vunpack.c.h.b16 %v910
      %v1097 = vunpack.c.l.b16 %v911
      %v1098 = vunpack.c.l.b16 %v912
      %v1099 = vunpack.c.h.b16 %v912
      %v1100 = vunpack.c.l.b16 %v913
      %v1101 = vunpack.c.h.b16 %v913
      %v1102 = vunpack.c.l.b16 %v914
      %v1103 = vunpack.c.h.b16 %v914
      %v1104 = vunpack.c.l.b16 %v915
      %v1105 = vunpack.c.l.b16 %v916
      %v1106 = vunpack.c.h.b16 %v916
      %v1107 = vunpack.c.l.b16 %v917
      %v1108 = vunpack.c.h.b16 %v917
      %v1109 = vunpack.c.l.b16 %v918
      %v1110 = vunpack.c.h.b16 %v918
      %v1111 = vunpack.c.l.b16 %v919
      %v1112 = vunpack.c.l.b16 %v920
      %v1113 = vunpack.c.h.b16 %v920
      %v1114 = vunpack.c.l.b16 %v921
      %v1115 = vunpack.c.h.b16 %v921
      %v1116 = vunpack.c.l.b16 %v922
      %v1117 = vunpack.c.h.b16 %v922
      %v1118 = vunpack.c.l.b16 %v923
      %v1119 = vunpack.c.l.b16 %v924
      %v1120 = vunpack.c.h.b16 %v924
      %v1121 = vunpack.c.l.b16 %v925
      %v1122 = vunpack.c.h.b16 %v925
      %v1123 = vunpack.c.l.b16 %v926
      %v1124 = vunpack.c.h.b16 %v926
      %v1125 = vunpack.c.l.b16 %v927
      %v1126 = vunpack.c.l.b16 %v928
      %v1127 = vunpack.c.h.b16 %v928
      %v1128 = vunpack.c.l.b16 %v929
      %v1129 = vunpack.c.h.b16 %v929
      %v1130 = vunpack.c.l.b16 %v930
      %v1131 = vunpack.c.h.b16 %v930
      %v1132 = vunpack.c.l.b16 %v931
      %v1133 = vunpack.c.l.b16 %v932
      %v1134 = vunpack.c.h.b16 %v932
      %v1135 = vunpack.c.l.b16 %v933
      %v1136 = vunpack.c.h.b16 %v933
      %v1137 = vunpack.c.l.b16 %v934
      %v1138 = vunpack.c.h.b16 %v934
      %v1139 = vunpack.c.l.b16 %v935
      %v1140 = vunpack.c.l.b16 %v936
      %v1141 = vunpack.c.h.b16 %v936
      %v1142 = vunpack.c.l.b16 %v937
      %v1143 = vunpack.c.h.b16 %v937
      %v1144 = vunpack.c.l.b16 %v938
      %v1145 = vunpack.c.h.b16 %v938
      %v1146 = vunpack.c.l.b16 %v939
      %v1147 = vunpack.c.l.b16 %v940
      %v1148 = vunpack.c.h.b16 %v940
      %v1149 = vunpack.c.l.b16 %v941
      %v1150 = vunpack.c.h.b16 %v941
      %v1151 = vunpack.c.l.b16 %v942
      %v1152 = vunpack.c.h.b16 %v942
      %v1153 = vunpack.c.l.b16 %v943
      %v1154 = vunpack.c.l.b16 %v944
      %v1155 = vunpack.c.h.b16 %v944
      %v1156 = vunpack.c.l.b16 %v945
      %v1157 = vunpack.c.h.b16 %v945
      %v1158 = vunpack.c.l.b16 %v946
      %v1159 = vunpack.c.h.b16 %v946
      %v1160 = vunpack.c.l.b16 %v947
      %v1161 = vpack.c.b16 %v1056, %v1049
      %v1162 = vpack.c.b16 %v1057, %v1050
      %v1163 = vpack.c.b16 %v1058, %v1051
      %v1164 = vpack.c.b16 %v1059, %v1052
      %v1165 = vpack.c.b16 %v1060, %v1053
      %v1166 = vpack.c.b16 %v1061, %v1054
      %v1167 = vpack.c.b16 %v1062, %v1055
      %v1168 = vpack.c.b16 %v1070, %v1063
      %v1169 = vpack.c.b16 %v1071, %v1064
      %v1170 = vpack.c.b16 %v1072, %v1065
      %v1171 = vpack.c.b16 %v1073, %v1066
      %v1172 = vpack.c.b16 %v1074, %v1067
      %v1173 = vpack.c.b16 %v1075, %v1068
      %v1174 = vpack.c.b16 %v1076, %v1069
      %v1175 = vpack.c.b16 %v1084, %v1077
      %v1176 = vpack.c.b16 %v1085, %v1078
      %v1177 = vpack.c.b16 %v1086, %v1079
      %v1178 = vpack.c.b16 %v1087, %v1080
      %v1179 = vpack.c.b16 %v1088, %v1081
      %v1180 = vpack.c.b16 %v1089, %v1082
      %v1181 = vpack.c.b16 %v1090, %v1083
      %v1182 = vpack.c.b16 %v1098, %v1091
      %v1183 = vpack.c.b16 %v1099, %v1092
      %v1184 = vpack.c.b16 %v1100, %v1093
      %v1185 = vpack.c.b16 %v1101, %v1094
      %v1186 = vpack.c.b16 %v1102, %v1095
      %v1187 = vpack.c.b16 %v1103, %v1096
      %v1188 = vpack.c.b16 %v1104, %v1097
      %v1189 = vpack.c.b16 %v1112, %v1105
      %v1190 = vpack.c.b16 %v1113, %v1106
      %v1191 = vpack.c.b16 %v1114, %v1107
      %v1192 = vpack.c.b16 %v1115, %v1108
      %v1193 = vpack.c.b16 %v1116, %v1109
      %v1194 = vpack.c.b16 %v1117, %v1110
      %v1195 = vpack.c.b16 %v1118, %v1111
      %v1196 = vpack.c.b16 %v1126, %v1119
      %v1197 = vpack.c.b16 %v1127, %v1120
      %v1198 = vpack.c.b16 %v1128, %v1121
      %v1199 = vpack.c.b16 %v1129, %v1122
      %v1200 = vpack.c.b16 %v1130, %v1123
      %v1201 = vpack.c.b16 %v1131, %v1124
      %v1202 = vpack.c.b16 %v1132, %v1125
      %v1203 = vpack.c.b16 %v1140, %v1133
      %v1204 = vpack.c.b16 %v1141, %v1134
      %v1205 = vpack.c.b16 %v1142, %v1135
      %v1206 = vpack.c.b16 %v1143, %v1136
      %v1207 = vpack.c.b16 %v1144, %v1137
      %v1208 = vpack.c.b16 %v1145, %v1138
      %v1209 = vpack.c.b16 %v1146, %v1139
      %v1210 = vpack.c.b16 %v1154, %v1147
      %v1211 = vpack.c.b16 %v1155, %v1148
      %v1212 = vpack.c.b16 %v1156, %v1149
      %v1213 = vpack.c.b16 %v1157, %v1150
      %v1214 = vpack.c.b16 %v1158, %v1151
      %v1215 = vpack.c.b16 %v1159, %v1152
      %v1216 = vpack.c.b16 %v1160, %v1153
      %1273 = vmatprep.subr.bf16.mxu0 %v1211
      %1274 = vmatpush1.bf16.msra.mxu0 %v1210
      %1275 = vmatprep.subr.bf16.mxu0 %v1204
      %1276 = vmatpush1.bf16.msra.mxu0 %v1203
      %1277 = vmatprep.subr.bf16.mxu0 %v1197
      %1278 = vmatpush1.bf16.msra.mxu0 %v1196
      %1279 = vmatprep.subr.bf16.mxu0 %v1190
      %1280 = vmatpush1.bf16.msra.mxu0 %v1189
      %1281 = vmatprep.subr.bf16.mxu0 %v1183
      %1282 = vmatpush1.bf16.msra.mxu0 %v1182
      %1283 = vmatprep.subr.bf16.mxu0 %v1176
      %1284 = vmatpush1.bf16.msra.mxu0 %v1175
      %1285 = vmatprep.subr.bf16.mxu0 %v1169
      %1286 = vmatpush1.bf16.msra.mxu0 %v1168
      %1287 = vmatprep.subr.bf16.mxu0 %v1162
      %1288 = vmatpush1.bf16.msra.mxu0 %v1161
      %1289 = vmatprep.subr.bf16.mxu0 0
      %1290 = vmatpush2.bf16.msra.mxu0 0
      %1291 = vmatprep.subr.bf16.mxu0 0
      %1292 = vmatpush2.bf16.msra.mxu0 0
      %1293 = vmatprep.subr.bf16.mxu0 0
      %1294 = vmatpush2.bf16.msra.mxu0 0
      %1295 = vmatprep.subr.bf16.mxu0 0
      %1296 = vmatpush2.bf16.msra.mxu0 0
      %1297 = vmatprep.subr.bf16.mxu0 0
      %1298 = vmatpush2.bf16.msra.mxu0 0
      %1299 = vmatprep.subr.bf16.mxu0 0
      %1300 = vmatpush2.bf16.msra.mxu0 0
      %1301 = vmatprep.subr.bf16.mxu0 0
      %1302 = vmatpush2.bf16.msra.mxu0 0
      %1303 = vmatprep.subr.bf16.mxu0 0
      %1304 = vmatpush2.bf16.msra.mxu0 0
      %1305 = vmatprep.mubr.bf16.mxu0 0
      %1306 = vmatmul.mubr.bf16.gmra.mxu0 %v882
      %v1307 = vpop.f32.mrf.mxu0
      %v1308 = vadd.f32 %v953, %v1307
      %v1309 = vpop.f32.mrf.mxu0
      %v1310 = vadd.f32 %v957, %v1309
      %v1311 = vpop.f32.mrf.mxu0
      %v1312 = vadd.f32 %v953, %v1311
      %v1313 = vpop.f32.mrf.mxu0
      %v1314 = vadd.f32 %v957, %v1313
      %1315 = vmatprep.mubr.bf16.mxu0 0
      %1316 = vmatmul.mubr.bf16.gmra.mxu0 %v883
      %v1317 = vpop.f32.mrf.mxu0
      %v1318 = vadd.f32 %v953, %v1317
      %v1319 = vpop.f32.mrf.mxu0
      %v1320 = vadd.f32 %v957, %v1319
      %v1321 = vpop.f32.mrf.mxu0
      %v1322 = vpop.f32.mrf.mxu0
      %1323 = vdwg.mxu0
      %1324 = vmatprep.subr.bf16.mxu0 %v1213
      %1325 = vmatpush1.bf16.msra.mxu0 %v1212
      %1326 = vmatprep.subr.bf16.mxu0 %v1206
      %1327 = vmatpush1.bf16.msra.mxu0 %v1205
      %1328 = vmatprep.subr.bf16.mxu0 %v1199
      %1329 = vmatpush1.bf16.msra.mxu0 %v1198
      %1330 = vmatprep.subr.bf16.mxu0 %v1192
      %1331 = vmatpush1.bf16.msra.mxu0 %v1191
      %1332 = vmatprep.subr.bf16.mxu0 %v1185
      %1333 = vmatpush1.bf16.msra.mxu0 %v1184
      %1334 = vmatprep.subr.bf16.mxu0 %v1178
      %1335 = vmatpush1.bf16.msra.mxu0 %v1177
      %1336 = vmatprep.subr.bf16.mxu0 %v1171
      %1337 = vmatpush1.bf16.msra.mxu0 %v1170
      %1338 = vmatprep.subr.bf16.mxu0 %v1164
      %1339 = vmatpush1.bf16.msra.mxu0 %v1163
      %1340 = vmatprep.subr.bf16.mxu0 0
      %1341 = vmatpush2.bf16.msra.mxu0 0
      %1342 = vmatprep.subr.bf16.mxu0 0
      %1343 = vmatpush2.bf16.msra.mxu0 0
      %1344 = vmatprep.subr.bf16.mxu0 0
      %1345 = vmatpush2.bf16.msra.mxu0 0
      %1346 = vmatprep.subr.bf16.mxu0 0
      %1347 = vmatpush2.bf16.msra.mxu0 0
      %1348 = vmatprep.subr.bf16.mxu0 0
      %1349 = vmatpush2.bf16.msra.mxu0 0
      %1350 = vmatprep.subr.bf16.mxu0 0
      %1351 = vmatpush2.bf16.msra.mxu0 0
      %1352 = vmatprep.subr.bf16.mxu0 0
      %1353 = vmatpush2.bf16.msra.mxu0 0
      %1354 = vmatprep.subr.bf16.mxu0 0
      %1355 = vmatpush2.bf16.msra.mxu0 0
      %1356 = vmatprep.mubr.bf16.mxu0 0
      %1357 = vmatmul.mubr.bf16.gmra.mxu0 %v882
      %v1358 = vpop.f32.mrf.mxu0
      %v1359 = vadd.f32 %v961, %v1358
      %v1360 = vpop.f32.mrf.mxu0
      %v1361 = vadd.f32 %v965, %v1360
      %v1362 = vpop.f32.mrf.mxu0
      %v1363 = vadd.f32 %v961, %v1362
      %v1364 = vpop.f32.mrf.mxu0
      %v1365 = vadd.f32 %v965, %v1364
      %1366 = vmatprep.mubr.bf16.mxu0 0
      %1367 = vmatmul.mubr.bf16.gmra.mxu0 %v883
      %v1368 = vpop.f32.mrf.mxu0
      %v1369 = vadd.f32 %v961, %v1368
      %v1370 = vpop.f32.mrf.mxu0
      %v1371 = vadd.f32 %v965, %v1370
      %v1372 = vpop.f32.mrf.mxu0
      %v1373 = vpop.f32.mrf.mxu0
      %1374 = vdwg.mxu0
      %1375 = vmatprep.subr.bf16.mxu0 %v1215
      %1376 = vmatpush1.bf16.msra.mxu0 %v1214
      %1377 = vmatprep.subr.bf16.mxu0 %v1208
      %1378 = vmatpush1.bf16.msra.mxu0 %v1207
      %1379 = vmatprep.subr.bf16.mxu0 %v1201
      %1380 = vmatpush1.bf16.msra.mxu0 %v1200
      %1381 = vmatprep.subr.bf16.mxu0 %v1194
      %1382 = vmatpush1.bf16.msra.mxu0 %v1193
      %1383 = vmatprep.subr.bf16.mxu0 %v1187
      %1384 = vmatpush1.bf16.msra.mxu0 %v1186
      %1385 = vmatprep.subr.bf16.mxu0 %v1180
      %1386 = vmatpush1.bf16.msra.mxu0 %v1179
      %1387 = vmatprep.subr.bf16.mxu0 %v1173
      %1388 = vmatpush1.bf16.msra.mxu0 %v1172
      %1389 = vmatprep.subr.bf16.mxu0 %v1166
      %1390 = vmatpush1.bf16.msra.mxu0 %v1165
      %1391 = vmatprep.subr.bf16.mxu0 0
      %1392 = vmatpush2.bf16.msra.mxu0 0
      %1393 = vmatprep.subr.bf16.mxu0 0
      %1394 = vmatpush2.bf16.msra.mxu0 0
      %1395 = vmatprep.subr.bf16.mxu0 0
      %1396 = vmatpush2.bf16.msra.mxu0 0
      %1397 = vmatprep.subr.bf16.mxu0 0
      %1398 = vmatpush2.bf16.msra.mxu0 0
      %1399 = vmatprep.subr.bf16.mxu0 0
      %1400 = vmatpush2.bf16.msra.mxu0 0
      %1401 = vmatprep.subr.bf16.mxu0 0
      %1402 = vmatpush2.bf16.msra.mxu0 0
      %1403 = vmatprep.subr.bf16.mxu0 0
      %1404 = vmatpush2.bf16.msra.mxu0 0
      %1405 = vmatprep.subr.bf16.mxu0 0
      %1406 = vmatpush2.bf16.msra.mxu0 0
      %1407 = vmatprep.mubr.bf16.mxu0 0
      %1408 = vmatmul.mubr.bf16.gmra.mxu0 %v882
      %v1409 = vpop.f32.mrf.mxu0
      %v1410 = vadd.f32 %v969, %v1409
      %v1411 = vpop.f32.mrf.mxu0
      %v1412 = vadd.f32 %v973, %v1411
      %v1413 = vpop.f32.mrf.mxu0
      %v1414 = vadd.f32 %v969, %v1413
      %v1415 = vpop.f32.mrf.mxu0
      %v1416 = vadd.f32 %v973, %v1415
      %1417 = vmatprep.mubr.bf16.mxu0 0
      %1418 = vmatmul.mubr.bf16.gmra.mxu0 %v883
      %v1419 = vpop.f32.mrf.mxu0
      %v1420 = vadd.f32 %v969, %v1419
      %v1421 = vpop.f32.mrf.mxu0
      %v1422 = vadd.f32 %v973, %v1421
      %v1423 = vpop.f32.mrf.mxu0
      %v1424 = vpop.f32.mrf.mxu0
      %1425 = vdwg.mxu0
      %1426 = vmatprep.subr.bf16.mxu0 0
      %1427 = vmatpush1.bf16.msra.mxu0 %v1216
      %1428 = vmatprep.subr.bf16.mxu0 0
      %1429 = vmatpush1.bf16.msra.mxu0 %v1209
      %1430 = vmatprep.subr.bf16.mxu0 0
      %1431 = vmatpush1.bf16.msra.mxu0 %v1202
      %1432 = vmatprep.subr.bf16.mxu0 0
      %1433 = vmatpush1.bf16.msra.mxu0 %v1195
      %1434 = vmatprep.subr.bf16.mxu0 0
      %1435 = vmatpush1.bf16.msra.mxu0 %v1188
      %1436 = vmatprep.subr.bf16.mxu0 0
      %1437 = vmatpush1.bf16.msra.mxu0 %v1181
      %1438 = vmatprep.subr.bf16.mxu0 0
      %1439 = vmatpush1.bf16.msra.mxu0 %v1174
      %1440 = vmatprep.subr.bf16.mxu0 0
      %1441 = vmatpush1.bf16.msra.mxu0 %v1167
      %1442 = vmatprep.subr.bf16.mxu0 0
      %1443 = vmatpush2.bf16.msra.mxu0 0
      %1444 = vmatprep.subr.bf16.mxu0 0
      %1445 = vmatpush2.bf16.msra.mxu0 0
      %1446 = vmatprep.subr.bf16.mxu0 0
      %1447 = vmatpush2.bf16.msra.mxu0 0
      %1448 = vmatprep.subr.bf16.mxu0 0
      %1449 = vmatpush2.bf16.msra.mxu0 0
      %1450 = vmatprep.subr.bf16.mxu0 0
      %1451 = vmatpush2.bf16.msra.mxu0 0
      %1452 = vmatprep.subr.bf16.mxu0 0
      %1453 = vmatpush2.bf16.msra.mxu0 0
      %1454 = vmatprep.subr.bf16.mxu0 0
      %1455 = vmatpush2.bf16.msra.mxu0 0
      %1456 = vmatprep.subr.bf16.mxu0 0
      %1457 = vmatpush2.bf16.msra.mxu0 0
      %1458 = vmatprep.mubr.bf16.mxu0 0
      %1459 = vmatmul.mubr.bf16.gmra.mxu0 %v882
      %v1460 = vpop.f32.mrf.mxu0
      %v1461 = vadd.f32 %v977, %v1460
      %v1462 = vpop.f32.mrf.mxu0
      %v1463 = vpop.f32.mrf.mxu0
      %v1464 = vadd.f32 %v977, %v1463
      %v1465 = vpop.f32.mrf.mxu0
      %1466 = vmatprep.mubr.bf16.mxu0 0
      %1467 = vmatmul.mubr.bf16.gmra.mxu0 %v883
      %v1468 = vpop.f32.mrf.mxu0
      %v1469 = vadd.f32 %v977, %v1468
      %v1470 = vpop.f32.mrf.mxu0
      %v1471 = vpop.f32.mrf.mxu0
      %v1472 = vpop.f32.mrf.mxu0
      %1473 = vdwg.mxu0
      %v1474 = vsub.f32 0.0, %v1308
      %v1475 = vsub.f32 0.0, %v1310
      %v1476 = vsub.f32 0.0, %v1359
      %v1477 = vsub.f32 0.0, %v1361
      %v1478 = vsub.f32 0.0, %v1410
      %v1479 = vsub.f32 0.0, %v1412
      %v1480 = vsub.f32 0.0, %v1461
      %v1481 = vsub.f32 0.0, %v1312
      %v1482 = vsub.f32 0.0, %v1314
      %v1483 = vsub.f32 0.0, %v1363
      %v1484 = vsub.f32 0.0, %v1365
      %v1485 = vsub.f32 0.0, %v1414
      %v1486 = vsub.f32 0.0, %v1416
      %v1487 = vsub.f32 0.0, %v1464
      %v1488 = vsub.f32 0.0, %v1318
      %v1489 = vsub.f32 0.0, %v1320
      %v1490 = vsub.f32 0.0, %v1369
      %v1491 = vsub.f32 0.0, %v1371
      %v1492 = vsub.f32 0.0, %v1420
      %v1493 = vsub.f32 0.0, %v1422
      %v1494 = vsub.f32 0.0, %v1469
      %v1495 = vmul.f32 %v1474, 1.442695
      %v1496 = vpow.pop %v1495
      %v1497 = vmul.f32 %v1475, 1.442695
      %v1498 = vpow.pop %v1497
      %v1499 = vmul.f32 %v1476, 1.442695
      %v1500 = vpow.pop %v1499
      %v1501 = vmul.f32 %v1477, 1.442695
      %v1502 = vpow.pop %v1501
      %v1503 = vmul.f32 %v1478, 1.442695
      %v1504 = vpow.pop %v1503
      %v1505 = vmul.f32 %v1479, 1.442695
      %v1506 = vpow.pop %v1505
      %v1507 = vmul.f32 %v1480, 1.442695
      %v1508 = vpow.pop %v1507
      %v1509 = vmul.f32 %v1481, 1.442695
      %v1510 = vpow.pop %v1509
      %v1511 = vmul.f32 %v1482, 1.442695
      %v1512 = vpow.pop %v1511
      %v1513 = vmul.f32 %v1483, 1.442695
      %v1514 = vpow.pop %v1513
      %v1515 = vmul.f32 %v1484, 1.442695
      %v1516 = vpow.pop %v1515
      %v1517 = vmul.f32 %v1485, 1.442695
      %v1518 = vpow.pop %v1517
      %v1519 = vmul.f32 %v1486, 1.442695
      %v1520 = vpow.pop %v1519
      %v1521 = vmul.f32 %v1487, 1.442695
      %v1522 = vpow.pop %v1521
      %v1523 = vmul.f32 %v1488, 1.442695
      %v1524 = vpow.pop %v1523
      %v1525 = vmul.f32 %v1489, 1.442695
      %v1526 = vpow.pop %v1525
      %v1527 = vmul.f32 %v1490, 1.442695
      %v1528 = vpow.pop %v1527
      %v1529 = vmul.f32 %v1491, 1.442695
      %v1530 = vpow.pop %v1529
      %v1531 = vmul.f32 %v1492, 1.442695
      %v1532 = vpow.pop %v1531
      %v1533 = vmul.f32 %v1493, 1.442695
      %v1534 = vpow.pop %v1533
      %v1535 = vmul.f32 %v1494, 1.442695
      %v1536 = vpow.pop %v1535
      %v1537 = vadd.f32 %v1496, 1.0
      %v1538 = vadd.f32 %v1498, 1.0
      %v1539 = vadd.f32 %v1500, 1.0
      %v1540 = vadd.f32 %v1502, 1.0
      %v1541 = vadd.f32 %v1504, 1.0
      %v1542 = vadd.f32 %v1506, 1.0
      %v1543 = vadd.f32 %v1508, 1.0
      %v1544 = vadd.f32 %v1510, 1.0
      %v1545 = vadd.f32 %v1512, 1.0
      %v1546 = vadd.f32 %v1514, 1.0
      %v1547 = vadd.f32 %v1516, 1.0
      %v1548 = vadd.f32 %v1518, 1.0
      %v1549 = vadd.f32 %v1520, 1.0
      %v1550 = vadd.f32 %v1522, 1.0
      %v1551 = vadd.f32 %v1524, 1.0
      %v1552 = vadd.f32 %v1526, 1.0
      %v1553 = vadd.f32 %v1528, 1.0
      %v1554 = vadd.f32 %v1530, 1.0
      %v1555 = vadd.f32 %v1532, 1.0
      %v1556 = vadd.f32 %v1534, 1.0
      %v1557 = vadd.f32 %v1536, 1.0
      %v1558 = vrcp.pop %v1537
      %v1559 = vrcp.pop %v1538
      %v1560 = vrcp.pop %v1539
      %v1561 = vrcp.pop %v1540
      %v1562 = vrcp.pop %v1541
      %v1563 = vrcp.pop %v1542
      %v1564 = vrcp.pop %v1543
      %v1565 = vrcp.pop %v1544
      %v1566 = vrcp.pop %v1545
      %v1567 = vrcp.pop %v1546
      %v1568 = vrcp.pop %v1547
      %v1569 = vrcp.pop %v1548
      %v1570 = vrcp.pop %v1549
      %v1571 = vrcp.pop %v1550
      %v1572 = vrcp.pop %v1551
      %v1573 = vrcp.pop %v1552
      %v1574 = vrcp.pop %v1553
      %v1575 = vrcp.pop %v1554
      %v1576 = vrcp.pop %v1555
      %v1577 = vrcp.pop %v1556
      %v1578 = vrcp.pop %v1557
      %v1579 = vpack.c.bf16 %v1565, %v1558
      %v1580 = vpack.c.bf16 %v1566, %v1559
      %v1581 = vpack.c.bf16 %v1567, %v1560
      %v1582 = vpack.c.bf16 %v1568, %v1561
      %v1583 = vpack.c.bf16 %v1569, %v1562
      %v1584 = vpack.c.bf16 %v1570, %v1563
      %v1585 = vpack.c.bf16 %v1571, %v1564
      %v1586 = vpack.c.bf16 %v1572, %v1572
      %v1587 = vpack.c.bf16 %v1573, %v1573
      %v1588 = vpack.c.bf16 %v1574, %v1574
      %v1589 = vpack.c.bf16 %v1575, %v1575
      %v1590 = vpack.c.bf16 %v1576, %v1576
      %v1591 = vpack.c.bf16 %v1577, %v1577
      %v1592 = vpack.c.bf16 %v1578, %v1578
      %v1607 = vunpack.c.l.b16 %v1579
      %v1608 = vunpack.c.l.b16 %v1580
      %v1609 = vunpack.c.l.b16 %v1581
      %v1610 = vunpack.c.l.b16 %v1582
      %v1611 = vunpack.c.l.b16 %v1583
      %v1612 = vunpack.c.l.b16 %v1584
      %v1613 = vunpack.c.l.b16 %v1585
      %v1614 = vunpack.c.h.b16 %v1579
      %v1615 = vunpack.c.h.b16 %v1580
      %v1616 = vunpack.c.h.b16 %v1581
      %v1617 = vunpack.c.h.b16 %v1582
      %v1618 = vunpack.c.h.b16 %v1583
      %v1619 = vunpack.c.h.b16 %v1584
      %v1620 = vunpack.c.h.b16 %v1585
      %v1621 = vunpack.c.l.b16 %v1586
      %v1622 = vunpack.c.l.b16 %v1587
      %v1623 = vunpack.c.l.b16 %v1588
      %v1624 = vunpack.c.l.b16 %v1589
      %v1625 = vunpack.c.l.b16 %v1590
      %v1626 = vunpack.c.l.b16 %v1591
      %v1627 = vunpack.c.l.b16 %v1592
      %v1628 = vpack.c.b16 %v1608, %v1607
      %v1629 = vpack.c.b16 %v1610, %v1609
      %v1630 = vpack.c.b16 %v1612, %v1611
      %v1631 = vpack.c.b16 %v1613, %v1613
      %v1632 = vpack.c.b16 %v1615, %v1614
      %v1633 = vpack.c.b16 %v1617, %v1616
      %v1634 = vpack.c.b16 %v1619, %v1618
      %v1635 = vpack.c.b16 %v1620, %v1620
      %v1636 = vpack.c.b16 %v1622, %v1621
      %v1637 = vpack.c.b16 %v1624, %v1623
      %v1638 = vpack.c.b16 %v1626, %v1625
      %v1639 = vpack.c.b16 %v1627, %v1627
      %1652 = vst [vmem:[%s231] sm:$0xff] %v1628
      %1653 = vst [vmem:[%s231 + $0x8] sm:$0xff] %v1629
      %1654 = vst [vmem:[%s231 + $0x10] sm:$0xff] %v1630
      %vm1655 = vcmask 125952
      %1656 = vst.msk [vmem:[%s231 + $0x18] sm:$0xf] %vm1655, %v1631
      %1657 = vst [vmem:[%s231 + $0x1c] sm:$0xff] %v1632
      %1658 = vst [vmem:[%s231 + $0x24] sm:$0xff] %v1633
      %1659 = vst [vmem:[%s231 + $0x2c] sm:$0xff] %v1634
      %1660 = vst.msk [vmem:[%s231 + $0x34] sm:$0xf] %vm1655, %v1635
      %1661 = vst [vmem:[%s231 + $0x38] sm:$0xff] %v1636
      %1662 = vst [vmem:[%s231 + $0x40] sm:$0xff] %v1637
      %1663 = vst [vmem:[%s231 + $0x48] sm:$0xff] %v1638
      %1664 = vst.msk [vmem:[%s231 + $0x50] sm:$0xf] %vm1655, %v1639
      %s1665 = smul.u32 3, %s16
      %p1666 = scmp.lt.s32.totalorder %s1665, 5
      %s1667 = scalar_select %p1666, %s1665, 5
      %s1668 = smul.addr %s1667, 7
      %s1669 = smul.addr %s1668, 4
      %s1670 = scalar_lea.vmem %s5, %s1669
      // Predicated region
      $region41: #{autoencoder_forward.1} parent=39 // pred_check
        %p1671 = pneg %p144
      $region42: #{autoencoder_forward.1} parent=39 // pred_check_branch
        %1673 = sbr.rel (%p1671) target = $region44
      $region43: #{autoencoder_forward.1} parent=39 // pred_region
        %s1674 = smul.u32 3, %s16
      $region44: #{autoencoder_forward.1} parent=39 // pred_fallthru
        _
    $region40: #{autoencoder_forward.1} parent=5 // pred_fallthru
      _
    %p1675 = scmp.le.s32.totalorder 2, %s11
    // Predicated region
    $region45: #{autoencoder_forward.1} parent=5 // pred_check
      %p1676 = pneg %p1675
    $region46: #{autoencoder_forward.1} parent=5 // pred_check_branch
      %1678 = sbr.rel (%p1676) target = $region48
    $region47: #{autoencoder_forward.1} parent=5 // pred_region
      %s1679 = ssub.s32 %s11, 2
      // Predicated region
      $region49: #{autoencoder_forward.1} parent=47 // pred_check
        %p1680 = pneg %p150
      $region50: #{autoencoder_forward.1} parent=47 // pred_check_branch
        %1682 = sbr.rel (%p1680) target = $region52
      $region51: #{autoencoder_forward.1} parent=47 // pred_region
        %s1683 = smul.u32 3, %s17
        %p1684 = scmp.lt.s32.totalorder %s1683, 5
        %s1685 = scalar_select %p1684, %s1683, 5
        %s1686 = smul.addr %s1685, 7
        %s1687 = smul.addr %s1686, 4
        %s1688 = scalar_lea.vmem %s5, %s1687
      $region52: #{autoencoder_forward.1} parent=47 // pred_fallthru
        _
    $region48: #{autoencoder_forward.1} parent=5 // pred_fallthru
      _
  $region6: #{autoencoder_forward.1} parent=0 // loop_footer
    %s15 = sadd.s32 1, %s11
  $region7: #{autoencoder_forward.1} parent=0 // loop_footer_branch
    %10 = sbr.rel target = $region3
  $region8: #{autoencoder_forward.1} parent=0 // loop_exit
    _

</llo_original>
